<compile_context>
chip_gen: v6e
topology: v6e:2x2x1
jax: 0.10.0
libtpu: 0.0.40
codegen_flags: <defaults>
</compile_context>

<pallas_src>
import functools

import jax
import jax.numpy as jnp
import numpy as np
from jax import lax
from jax.experimental import pallas as pl
from jax.experimental.pallas import tpu as pltpu


# ----------------------------------------------------------------------------
# Fused encoder kernel (Bb batch elements per grid step, lanes = batch*time)
# ----------------------------------------------------------------------------
def _encoder_kernel(x_ref, w1_ref, b1_ref, w2_ref, b2_ref, w3_ref, b3_ref,
                    mask_ref, *rest, n_conv, k_size, neg_slope, bb, seq_len):
    # x_ref   : (1, C_in, Bb*L)   Bb elements laid side-by-side along lanes
    # w1_ref  : (K, C, C_in)      conv_block1 taps ; b1_ref: (C, 1)
    # w2_ref  : (K, C, C)         conv_block2 taps ; b2_ref: (C, 1)
    # w3_ref  : (n3, K, C, C)     pooled-block taps; b3_ref: (n3, C, 1)
    # mask_ref: (1, Bb*L - 2)     zeros on the inter-element garbage columns
    # rest    : n_sel selection matrices (pool+compact, or compaction if n_conv==0),
    #           then the output ref (1, C, Bb*L_final).
    sel_refs = rest[:-1]
    o_ref = rest[-1]

    K = k_size
    f32 = jnp.float32
    C = w1_ref.shape[1]
    n0 = bb * seq_len                 # total lane width of the raw input block
    del seq_len

    def leaky(y):
        return jnp.maximum(y, neg_slope * y)

    def conv(y, w_of_k, b, n_in):
        # Shifted-accumulate Conv1d (valid), batched over all Bb elements at once.
        # y: (Cin, n_in) -> (C, n_in - K + 1). Columns that straddle an element
        # boundary are garbage and are masked / never selected downstream.
        n_out = n_in - (K - 1)
        acc = jnp.dot(w_of_k(0), y[:, 0:n_out], preferred_element_type=f32)
        for k in range(1, K):
            acc = acc + jnp.dot(w_of_k(k), y[:, k:k + n_out],
                                preferred_element_type=f32)
        return leaky(acc + b)

    # ---- conv_block1: Conv1d(C_in -> C, k=3, pad=0) + LeakyReLU -------------
    x = x_ref[0].astype(f32)                                  # (C_in, n0)
    y = conv(x, lambda k: w1_ref[k], b1_ref[...], n0)         # (C, n0 - 2)

    # ---- conv_block2: Conv1d(C -> C, k=3, pad=1) + LeakyReLU ----------------
    # Zero the (K-1) garbage columns between elements (they are exactly where the
    # per-element zero padding must sit), then add one zero column at each end.
    y = y * mask_ref[...]
    zc = jnp.zeros((C, 1), f32)
    z = jnp.concatenate([zc, y, zc], axis=1)                  # (C, n0)
    y = conv(z, lambda k: w2_ref[k], b2_ref[...], n0)         # (C, n0 - 2)
    nt = n0 - (K - 1)
    # layout: element j's valid data at columns [j*L, j*L + l1)

    # ---- conv_block3[i]: Conv1d(k=3, pad=0) + LeakyReLU + MaxPool1d(2, 2) ----
    for i in range(n_conv):                                   # static unroll
        yc = conv(y, lambda k, i=i: w3_ref[i, k], b3_ref[i], nt)   # (C, nt-2)
        ym = jnp.maximum(yc[:, 0:nt - 3], yc[:, 1:nt - 2])         # pairwise max
        # Even-column pick + per-element compaction in ONE 0/1 matmul (MXU slack).
        y = jnp.dot(ym, sel_refs[i][...], preferred_element_type=f32)
        nt = y.shape[1]                                            # = bb * l_pool

    if n_conv == 0:
        # Compact the per-element slots (drop inter-element garbage columns).
        y = jnp.dot(y, sel_refs[0][...], preferred_element_type=f32)

    o_ref[0] = y.astype(o_ref.dtype)                          # (C, Bb*L_final)


# ----------------------------------------------------------------------------
# Wrapper: layout plumbing, weight folding, selection matrices, one pallas_call
# ----------------------------------------------------------------------------
def one_d_cnn_encoder(x, params, n_conv, *, kernel_size=3, neg_slope=0.01,
                      batch_tile=None):
    """OneDCnnEncoder forward. x: (B, C_in, L) -> (B, d_model, L_final)."""
    B, C_in, L = x.shape
    K = kernel_size
    if K != 3:
        raise NotImplementedError("lane layout assumes kernel_size=3 (module default)")

    w1, b1 = params["w1"], params["b1"]
    w2, b2 = params["w2"], params["b2"]
    C = w1.shape[0]                    # d_model
    f32 = jnp.float32

    # ---- per-element length schedule (+ explicit validity guard) ------------
    l1 = L - (K - 1)                   # conv_block1 (pad=0)
    if l1 < 1:
        raise ValueError(f"sequence length {L} too short for kernel_size={K}")
    l2 = l1                            # conv_block2 (pad=1 -> same length)
    lens_in, lens_pool = [], []
    l = l2
    for _ in range(n_conv):
        lo = l - (K - 1)
        if lo < 2:
            raise ValueError(f"sequence length {L} too short for n_conv={n_conv}")
        lens_in.append(l)
        lens_pool.append(lo // 2)
        l = lo // 2
    L_final = l

    # ---- batch tile: lane-batch Bb elements, keep grid >= 2 for v7x ---------
    if batch_tile is None:
        cap = min(8, max(1, B // 2))
        batch_tile = next(bb for bb in range(cap, 0, -1) if B % bb == 0)
    bb = batch_tile
    if B % bb != 0:
        raise ValueError("batch_tile must divide the batch size")
    G = B // bb
    n0 = bb * L

    # ---- fold conv weights to per-tap stacks (K, C_out, C_in) ---------------
    def taps(w):
        return jnp.transpose(w, (2, 0, 1)).astype(f32)

    w1s, b1c = taps(w1), b1.reshape(C, 1).astype(f32)
    w2s, b2c = taps(w2), b2.reshape(C, 1).astype(f32)
    if n_conv > 0:
        w3s = jnp.stack([taps(w) for w in params["w3"]], axis=0)       # (n_conv,K,C,C)
        b3c = jnp.stack([b.reshape(C, 1) for b in params["b3"]], axis=0).astype(f32)
    else:
        w3s = jnp.zeros((1, K, C, C), f32)
        b3c = jnp.zeros((1, C, 1), f32)

    # ---- precomputed lane mask + selection matrices (hoisted, 0/1, f32) -----
    col = np.arange(n0 - (K - 1))
    mask = jnp.asarray(((col % L) < l1).astype(np.float32))[None, :]   # (1, n0-2)

    sel_mats = []
    if n_conv > 0:
        nt = n0 - (K - 1)              # total width entering conv_block3[0]
        slot = L                       # per-element column stride at that point
        for i in range(n_conv):
            lp = lens_pool[i]
            S = np.zeros((nt - 3, bb * lp), np.float32)
            for j in range(bb):
                for q in range(lp):
                    S[j * slot + 2 * q, j * lp + q] = 1.0
            sel_mats.append(jnp.asarray(S))
            nt = bb * lp               # output of selection is dense
            slot = lp
    else:
        S = np.zeros((n0 - (K - 1), bb * l1), np.float32)
        for j in range(bb):
            for p in range(l1):
                S[j * L + p, j * l1 + p] = 1.0
        sel_mats.append(jnp.asarray(S))

    # ---- lane-batched input layout: (G, C_in, Bb*L) (layout plumbing only) --
    x_g = (x.reshape(G, bb, C_in, L).transpose(0, 2, 1, 3)
            .reshape(G, C_in, n0).astype(f32))

    # ---- advisory cost estimate for XLA scheduling ---------------------------
    conv_sizes = ([(C, C_in, l1), (C, C, l2)]
                  + [(C, C, lens_in[i] - (K - 1)) for i in range(n_conv)])
    flops = 2 * B * K * sum(co * ci * lo for co, ci, lo in conv_sizes)
    flops += 2 * G * C * sum(int(S.shape[0]) * int(S.shape[1]) for S in sel_mats)
    bytes_accessed = 4 * (x_g.size + w1s.size + w2s.size + w3s.size
                          + b1c.size + b2c.size + b3c.size + mask.size
                          + sum(int(S.size) for S in sel_mats)
                          + B * C * L_final)
    cost = pl.CostEstimate(flops=int(flops), transcendentals=0,
                           bytes_accessed=int(bytes_accessed))

    kernel = functools.partial(_encoder_kernel, n_conv=n_conv, k_size=K,
                               neg_slope=neg_slope, bb=bb, seq_len=L)

    def const(shape):
        nd = len(shape)
        return pl.BlockSpec(shape, lambda i, _nd=nd: (0,) * _nd)

    in_specs = [
        pl.BlockSpec((1, C_in, n0), lambda i: (i, 0, 0)),
        const(w1s.shape), const(b1c.shape),
        const(w2s.shape), const(b2c.shape),
        const(w3s.shape), const(b3c.shape),
        const(mask.shape),
    ] + [const(S.shape) for S in sel_mats]

    out = pl.pallas_call(
        kernel,
        out_shape=jax.ShapeDtypeStruct((G, C, bb * L_final), x.dtype),
        grid=(G,),
        in_specs=in_specs,
        out_specs=pl.BlockSpec((1, C, bb * L_final), lambda i: (i, 0, 0)),
        compiler_params=pltpu.CompilerParams(
            dimension_semantics=("parallel",)),
        cost_estimate=cost,
    )(x_g, w1s, b1c, w2s, b2c, w3s, b3c, mask, *sel_mats)

    # (G, C, Bb*L_final) -> (B, C, L_final)
    return (out.reshape(G, C, bb, L_final).transpose(0, 2, 1, 3)
               .reshape(B, C, L_final))


# ----------------------------------------------------------------------------
# Parameter init (matches the PyTorch module's shapes)
# ----------------------------------------------------------------------------
def init_params(key, in_channels, d_model, n_conv, kernel_size=3):
    ks = jax.random.split(key, 2 * (2 + n_conv))
    scale = 0.1

    def conv_p(kw, kb, cin, cout):
        w = scale * jax.random.normal(kw, (cout, cin, kernel_size), jnp.float32)
        b = scale * jax.random.normal(kb, (cout,), jnp.float32)
        return w, b

    p = {}
    p["w1"], p["b1"] = conv_p(ks[0], ks[1], in_channels, d_model)
    p["w2"], p["b2"] = conv_p(ks[2], ks[3], d_model, d_model)
    p["w3"], p["b3"] = [], []
    for i in range(n_conv):
        w, b = conv_p(ks[4 + 2 * i], ks[5 + 2 * i], d_model, d_model)
        p["w3"].append(w)
        p["b3"].append(b)
    return p


# ----------------------------------------------------------------------------
# Pure-JAX reference (for numerical verification)
# ----------------------------------------------------------------------------
def _ref_conv_block(x, w, b, *, padding=0, maxpool=False, neg_slope=0.01):
    y = lax.conv_general_dilated(
        x, w, window_strides=(1,), padding=[(padding, padding)],
        dimension_numbers=("NCH", "OIH", "NCH"))
    y = y + b[None, :, None]
    y = jnp.where(y >= 0, y, neg_slope * y)
    if maxpool:
        y = lax.reduce_window(y, -jnp.inf, lax.max,
                              window_dimensions=(1, 1, 2),
                              window_strides=(1, 1, 2), padding="VALID")
    return y


def _ref_encoder(x, params, n_conv):
    out = _ref_conv_block(x, params["w1"], params["b1"], padding=0)
    out = _ref_conv_block(out, params["w2"], params["b2"], padding=1)
    for i in range(n_conv):
        out = _ref_conv_block(out, params["w3"][i], params["b3"][i],
                              padding=0, maxpool=True)
    return out


# ----------------------------------------------------------------------------
if __name__ == "__main__":
    cnn_config = {
        "n_conv": 2,
        "n_filters": 32,   # unused in forward
        "d_model": 32,
        "d_proj": 16,      # unused in forward
        "in_channels": 4,
    }
    # B=4 -> batch_tile=2, grid=2: exercises lane-batching (masking / garbage
    # handling between elements) AND keeps two grid steps for v7x's two TCs.
    B, L = 4, 64

    key = jax.random.PRNGKey(0)
    k_params, k_x = jax.random.split(key)
    params = init_params(k_params, cnn_config["in_channels"],
                         cnn_config["d_model"], cnn_config["n_conv"])
    x = jax.random.normal(k_x, (B, cnn_config["in_channels"], L), jnp.float32)

    out = one_d_cnn_encoder(x, params, cnn_config["n_conv"])
    out = jax.block_until_ready(out)

    ref = jax.block_until_ready(_ref_encoder(x, params, cnn_config["n_conv"]))
    np.testing.assert_allclose(np.asarray(out), np.asarray(ref),
                               rtol=1e-5, atol=1e-5)

    print("KERNEL_OK")
</pallas_src>

<mosaic_0001>
module attributes {stable_mosaic.version = 11 : i64} {
  func.func @_encoder_kernel(%arg0: i32, %arg1: memref<1x4x128xf32, #tpu.memory_space<vmem>>, %arg2: memref<3x32x4xf32, #tpu.memory_space<vmem>>, %arg3: memref<32x1xf32, #tpu.memory_space<vmem>>, %arg4: memref<3x32x32xf32, #tpu.memory_space<vmem>>, %arg5: memref<32x1xf32, #tpu.memory_space<vmem>>, %arg6: memref<2x3x32x32xf32, #tpu.memory_space<vmem>>, %arg7: memref<2x32x1xf32, #tpu.memory_space<vmem>>, %arg8: memref<1x126xf32, #tpu.memory_space<vmem>>, %arg9: memref<123x60xf32, #tpu.memory_space<vmem>>, %arg10: memref<57x28xf32, #tpu.memory_space<vmem>>, %arg11: memref<1x32x28xf32, #tpu.memory_space<vmem>>) attributes {dimension_semantics = [#tpu.dimension_semantics<parallel>], iteration_bounds = array<i64: 2>, scalar_prefetch = 0 : i64, scratch_operands = 0 : i64, tpu.core_type = #tpu.core_type<tc>, window_params = [{transform_indices = @transform_0, window_bounds = array<i64: 1, 4, 128>}, {pipeline_mode = #tpu.pipeline_mode<synchronous>, transform_indices = @transform_1, window_bounds = array<i64: 3, 32, 4>}, {pipeline_mode = #tpu.pipeline_mode<synchronous>, transform_indices = @transform_2, window_bounds = array<i64: 32, 1>}, {pipeline_mode = #tpu.pipeline_mode<synchronous>, transform_indices = @transform_3, window_bounds = array<i64: 3, 32, 32>}, {pipeline_mode = #tpu.pipeline_mode<synchronous>, transform_indices = @transform_4, window_bounds = array<i64: 32, 1>}, {pipeline_mode = #tpu.pipeline_mode<synchronous>, transform_indices = @transform_5, window_bounds = array<i64: 2, 3, 32, 32>}, {pipeline_mode = #tpu.pipeline_mode<synchronous>, transform_indices = @transform_6, window_bounds = array<i64: 2, 32, 1>}, {pipeline_mode = #tpu.pipeline_mode<synchronous>, transform_indices = @transform_7, window_bounds = array<i64: 1, 126>}, {pipeline_mode = #tpu.pipeline_mode<synchronous>, transform_indices = @transform_8, window_bounds = array<i64: 123, 60>}, {pipeline_mode = #tpu.pipeline_mode<synchronous>, transform_indices = @transform_9, window_bounds = array<i64: 57, 28>}, {transform_indices = @transform_10, window_bounds = array<i64: 1, 32, 28>}]} {
    %c0 = arith.constant 0 : index
    %c0_0 = arith.constant 0 : index
    %c0_1 = arith.constant 0 : index
    %0 = vector.load %arg1[%c0, %c0_0, %c0_1] : memref<1x4x128xf32, #tpu.memory_space<vmem>>, vector<1x4x128xf32>
    %1 = vector.shape_cast %0 : vector<1x4x128xf32> to vector<4x128xf32>
    %c0_2 = arith.constant 0 : index
    %c0_3 = arith.constant 0 : index
    %2 = vector.load %arg3[%c0_2, %c0_3] : memref<32x1xf32, #tpu.memory_space<vmem>>, vector<32x1xf32>
    %c0_4 = arith.constant 0 : index
    %c0_5 = arith.constant 0 : index
    %c0_6 = arith.constant 0 : index
    %3 = vector.load %arg2[%c0_4, %c0_5, %c0_6] : memref<3x32x4xf32, #tpu.memory_space<vmem>>, vector<1x32x4xf32>
    %4 = vector.shape_cast %3 : vector<1x32x4xf32> to vector<32x4xf32>
    %5 = vector.extract_strided_slice %1 {offsets = [0, 0], sizes = [4, 126], strides = [1, 1]} : vector<4x128xf32> to vector<4x126xf32>
    %cst = arith.constant dense<0.000000e+00> : vector<32x126xf32>
    %6 = tpu.matmul %4, %5, %cst {dimension_numbers = #tpu.dot_dimension_numbers<[1], [0], [0], [1], [0, 0, 1, 1], [], []>} : vector<32x4xf32>, vector<4x126xf32>, vector<32x126xf32> -> vector<32x126xf32>
    %c1 = arith.constant 1 : index
    %c0_7 = arith.constant 0 : index
    %c0_8 = arith.constant 0 : index
    %7 = vector.load %arg2[%c1, %c0_7, %c0_8] : memref<3x32x4xf32, #tpu.memory_space<vmem>>, vector<1x32x4xf32>
    %8 = vector.shape_cast %7 : vector<1x32x4xf32> to vector<32x4xf32>
    %9 = vector.extract_strided_slice %1 {offsets = [0, 1], sizes = [4, 126], strides = [1, 1]} : vector<4x128xf32> to vector<4x126xf32>
    %cst_9 = arith.constant dense<0.000000e+00> : vector<32x126xf32>
    %10 = tpu.matmul %8, %9, %cst_9 {dimension_numbers = #tpu.dot_dimension_numbers<[1], [0], [0], [1], [0, 0, 1, 1], [], []>} : vector<32x4xf32>, vector<4x126xf32>, vector<32x126xf32> -> vector<32x126xf32>
    %11 = arith.addf %6, %10 : vector<32x126xf32>
    %c2 = arith.constant 2 : index
    %c0_10 = arith.constant 0 : index
    %c0_11 = arith.constant 0 : index
    %12 = vector.load %arg2[%c2, %c0_10, %c0_11] : memref<3x32x4xf32, #tpu.memory_space<vmem>>, vector<1x32x4xf32>
    %13 = vector.shape_cast %12 : vector<1x32x4xf32> to vector<32x4xf32>
    %14 = vector.extract_strided_slice %1 {offsets = [0, 2], sizes = [4, 126], strides = [1, 1]} : vector<4x128xf32> to vector<4x126xf32>
    %cst_12 = arith.constant dense<0.000000e+00> : vector<32x126xf32>
    %15 = tpu.matmul %13, %14, %cst_12 {dimension_numbers = #tpu.dot_dimension_numbers<[1], [0], [0], [1], [0, 0, 1, 1], [], []>} : vector<32x4xf32>, vector<4x126xf32>, vector<32x126xf32> -> vector<32x126xf32>
    %16 = arith.addf %11, %15 : vector<32x126xf32>
    %17 = vector.broadcast %2 : vector<32x1xf32> to vector<32x126xf32>
    %18 = arith.addf %16, %17 : vector<32x126xf32>
    %cst_13 = arith.constant 0.00999999977 : f32
    %19 = vector.broadcast %cst_13 : f32 to vector<32x126xf32>
    %20 = arith.mulf %19, %18 : vector<32x126xf32>
    %21 = arith.maximumf %18, %20 : vector<32x126xf32>
    %c0_14 = arith.constant 0 : index
    %c0_15 = arith.constant 0 : index
    %22 = vector.load %arg8[%c0_14, %c0_15] : memref<1x126xf32, #tpu.memory_space<vmem>>, vector<1x126xf32>
    %23 = vector.broadcast %22 : vector<1x126xf32> to vector<32x126xf32>
    %24 = arith.mulf %21, %23 : vector<32x126xf32>
    %cst_16 = arith.constant 0.000000e+00 : f32
    %25 = vector.broadcast %cst_16 : f32 to vector<32x1xf32>
    %26 = tpu.concatenate %25, %24, %25 in 1 : vector<32x1xf32>, vector<32x126xf32>, vector<32x1xf32> -> vector<32x128xf32>
    %c0_17 = arith.constant 0 : index
    %c0_18 = arith.constant 0 : index
    %27 = vector.load %arg5[%c0_17, %c0_18] : memref<32x1xf32, #tpu.memory_space<vmem>>, vector<32x1xf32>
    %c0_19 = arith.constant 0 : index
    %c0_20 = arith.constant 0 : index
    %c0_21 = arith.constant 0 : index
    %28 = vector.load %arg4[%c0_19, %c0_20, %c0_21] : memref<3x32x32xf32, #tpu.memory_space<vmem>>, vector<1x32x32xf32>
    %29 = vector.shape_cast %28 : vector<1x32x32xf32> to vector<32x32xf32>
    %30 = vector.extract_strided_slice %26 {offsets = [0, 0], sizes = [32, 126], strides = [1, 1]} : vector<32x128xf32> to vector<32x126xf32>
    %cst_22 = arith.constant dense<0.000000e+00> : vector<32x126xf32>
    %31 = tpu.matmul %29, %30, %cst_22 {dimension_numbers = #tpu.dot_dimension_numbers<[1], [0], [0], [1], [0, 0, 1, 1], [], []>} : vector<32x32xf32>, vector<32x126xf32>, vector<32x126xf32> -> vector<32x126xf32>
    %c1_23 = arith.constant 1 : index
    %c0_24 = arith.constant 0 : index
    %c0_25 = arith.constant 0 : index
    %32 = vector.load %arg4[%c1_23, %c0_24, %c0_25] : memref<3x32x32xf32, #tpu.memory_space<vmem>>, vector<1x32x32xf32>
    %33 = vector.shape_cast %32 : vector<1x32x32xf32> to vector<32x32xf32>
    %34 = vector.extract_strided_slice %26 {offsets = [0, 1], sizes = [32, 126], strides = [1, 1]} : vector<32x128xf32> to vector<32x126xf32>
    %cst_26 = arith.constant dense<0.000000e+00> : vector<32x126xf32>
    %35 = tpu.matmul %33, %34, %cst_26 {dimension_numbers = #tpu.dot_dimension_numbers<[1], [0], [0], [1], [0, 0, 1, 1], [], []>} : vector<32x32xf32>, vector<32x126xf32>, vector<32x126xf32> -> vector<32x126xf32>
    %36 = arith.addf %31, %35 : vector<32x126xf32>
    %c2_27 = arith.constant 2 : index
    %c0_28 = arith.constant 0 : index
    %c0_29 = arith.constant 0 : index
    %37 = vector.load %arg4[%c2_27, %c0_28, %c0_29] : memref<3x32x32xf32, #tpu.memory_space<vmem>>, vector<1x32x32xf32>
    %38 = vector.shape_cast %37 : vector<1x32x32xf32> to vector<32x32xf32>
    %39 = vector.extract_strided_slice %26 {offsets = [0, 2], sizes = [32, 126], strides = [1, 1]} : vector<32x128xf32> to vector<32x126xf32>
    %cst_30 = arith.constant dense<0.000000e+00> : vector<32x126xf32>
    %40 = tpu.matmul %38, %39, %cst_30 {dimension_numbers = #tpu.dot_dimension_numbers<[1], [0], [0], [1], [0, 0, 1, 1], [], []>} : vector<32x32xf32>, vector<32x126xf32>, vector<32x126xf32> -> vector<32x126xf32>
    %41 = arith.addf %36, %40 : vector<32x126xf32>
    %42 = vector.broadcast %27 : vector<32x1xf32> to vector<32x126xf32>
    %43 = arith.addf %41, %42 : vector<32x126xf32>
    %cst_31 = arith.constant 0.00999999977 : f32
    %44 = vector.broadcast %cst_31 : f32 to vector<32x126xf32>
    %45 = arith.mulf %44, %43 : vector<32x126xf32>
    %46 = arith.maximumf %43, %45 : vector<32x126xf32>
    %c0_32 = arith.constant 0 : index
    %c0_33 = arith.constant 0 : index
    %c0_34 = arith.constant 0 : index
    %47 = vector.load %arg7[%c0_32, %c0_33, %c0_34] : memref<2x32x1xf32, #tpu.memory_space<vmem>>, vector<1x32x1xf32>
    %48 = vector.shape_cast %47 : vector<1x32x1xf32> to vector<32x1xf32>
    %c0_35 = arith.constant 0 : index
    %c0_36 = arith.constant 0 : index
    %c0_37 = arith.constant 0 : index
    %c0_38 = arith.constant 0 : index
    %49 = vector.load %arg6[%c0_35, %c0_36, %c0_37, %c0_38] : memref<2x3x32x32xf32, #tpu.memory_space<vmem>>, vector<1x1x32x32xf32>
    %50 = vector.shape_cast %49 : vector<1x1x32x32xf32> to vector<32x32xf32>
    %51 = vector.extract_strided_slice %46 {offsets = [0, 0], sizes = [32, 124], strides = [1, 1]} : vector<32x126xf32> to vector<32x124xf32>
    %cst_39 = arith.constant dense<0.000000e+00> : vector<32x124xf32>
    %52 = tpu.matmul %50, %51, %cst_39 {dimension_numbers = #tpu.dot_dimension_numbers<[1], [0], [0], [1], [0, 0, 1, 1], [], []>} : vector<32x32xf32>, vector<32x124xf32>, vector<32x124xf32> -> vector<32x124xf32>
    %c0_40 = arith.constant 0 : index
    %c1_41 = arith.constant 1 : index
    %c0_42 = arith.constant 0 : index
    %c0_43 = arith.constant 0 : index
    %53 = vector.load %arg6[%c0_40, %c1_41, %c0_42, %c0_43] : memref<2x3x32x32xf32, #tpu.memory_space<vmem>>, vector<1x1x32x32xf32>
    %54 = vector.shape_cast %53 : vector<1x1x32x32xf32> to vector<32x32xf32>
    %55 = vector.extract_strided_slice %46 {offsets = [0, 1], sizes = [32, 124], strides = [1, 1]} : vector<32x126xf32> to vector<32x124xf32>
    %cst_44 = arith.constant dense<0.000000e+00> : vector<32x124xf32>
    %56 = tpu.matmul %54, %55, %cst_44 {dimension_numbers = #tpu.dot_dimension_numbers<[1], [0], [0], [1], [0, 0, 1, 1], [], []>} : vector<32x32xf32>, vector<32x124xf32>, vector<32x124xf32> -> vector<32x124xf32>
    %57 = arith.addf %52, %56 : vector<32x124xf32>
    %c0_45 = arith.constant 0 : index
    %c2_46 = arith.constant 2 : index
    %c0_47 = arith.constant 0 : index
    %c0_48 = arith.constant 0 : index
    %58 = vector.load %arg6[%c0_45, %c2_46, %c0_47, %c0_48] : memref<2x3x32x32xf32, #tpu.memory_space<vmem>>, vector<1x1x32x32xf32>
    %59 = vector.shape_cast %58 : vector<1x1x32x32xf32> to vector<32x32xf32>
    %60 = vector.extract_strided_slice %46 {offsets = [0, 2], sizes = [32, 124], strides = [1, 1]} : vector<32x126xf32> to vector<32x124xf32>
    %cst_49 = arith.constant dense<0.000000e+00> : vector<32x124xf32>
    %61 = tpu.matmul %59, %60, %cst_49 {dimension_numbers = #tpu.dot_dimension_numbers<[1], [0], [0], [1], [0, 0, 1, 1], [], []>} : vector<32x32xf32>, vector<32x124xf32>, vector<32x124xf32> -> vector<32x124xf32>
    %62 = arith.addf %57, %61 : vector<32x124xf32>
    %63 = vector.broadcast %48 : vector<32x1xf32> to vector<32x124xf32>
    %64 = arith.addf %62, %63 : vector<32x124xf32>
    %cst_50 = arith.constant 0.00999999977 : f32
    %65 = vector.broadcast %cst_50 : f32 to vector<32x124xf32>
    %66 = arith.mulf %65, %64 : vector<32x124xf32>
    %67 = arith.maximumf %64, %66 : vector<32x124xf32>
    %68 = vector.extract_strided_slice %67 {offsets = [0, 0], sizes = [32, 123], strides = [1, 1]} : vector<32x124xf32> to vector<32x123xf32>
    %69 = vector.extract_strided_slice %67 {offsets = [0, 1], sizes = [32, 123], strides = [1, 1]} : vector<32x124xf32> to vector<32x123xf32>
    %70 = arith.maximumf %68, %69 : vector<32x123xf32>
    %c0_51 = arith.constant 0 : index
    %c0_52 = arith.constant 0 : index
    %71 = vector.load %arg9[%c0_51, %c0_52] : memref<123x60xf32, #tpu.memory_space<vmem>>, vector<123x60xf32>
    %cst_53 = arith.constant dense<0.000000e+00> : vector<32x60xf32>
    %72 = tpu.matmul %70, %71, %cst_53 {dimension_numbers = #tpu.dot_dimension_numbers<[1], [0], [0], [1], [0, 0, 1, 1], [], []>} : vector<32x123xf32>, vector<123x60xf32>, vector<32x60xf32> -> vector<32x60xf32>
    %c1_54 = arith.constant 1 : index
    %c0_55 = arith.constant 0 : index
    %c0_56 = arith.constant 0 : index
    %73 = vector.load %arg7[%c1_54, %c0_55, %c0_56] : memref<2x32x1xf32, #tpu.memory_space<vmem>>, vector<1x32x1xf32>
    %74 = vector.shape_cast %73 : vector<1x32x1xf32> to vector<32x1xf32>
    %c1_57 = arith.constant 1 : index
    %c0_58 = arith.constant 0 : index
    %c0_59 = arith.constant 0 : index
    %c0_60 = arith.constant 0 : index
    %75 = vector.load %arg6[%c1_57, %c0_58, %c0_59, %c0_60] : memref<2x3x32x32xf32, #tpu.memory_space<vmem>>, vector<1x1x32x32xf32>
    %76 = vector.shape_cast %75 : vector<1x1x32x32xf32> to vector<32x32xf32>
    %77 = vector.extract_strided_slice %72 {offsets = [0, 0], sizes = [32, 58], strides = [1, 1]} : vector<32x60xf32> to vector<32x58xf32>
    %cst_61 = arith.constant dense<0.000000e+00> : vector<32x58xf32>
    %78 = tpu.matmul %76, %77, %cst_61 {dimension_numbers = #tpu.dot_dimension_numbers<[1], [0], [0], [1], [0, 0, 1, 1], [], []>} : vector<32x32xf32>, vector<32x58xf32>, vector<32x58xf32> -> vector<32x58xf32>
    %c1_62 = arith.constant 1 : index
    %c1_63 = arith.constant 1 : index
    %c0_64 = arith.constant 0 : index
    %c0_65 = arith.constant 0 : index
    %79 = vector.load %arg6[%c1_62, %c1_63, %c0_64, %c0_65] : memref<2x3x32x32xf32, #tpu.memory_space<vmem>>, vector<1x1x32x32xf32>
    %80 = vector.shape_cast %79 : vector<1x1x32x32xf32> to vector<32x32xf32>
    %81 = vector.extract_strided_slice %72 {offsets = [0, 1], sizes = [32, 58], strides = [1, 1]} : vector<32x60xf32> to vector<32x58xf32>
    %cst_66 = arith.constant dense<0.000000e+00> : vector<32x58xf32>
    %82 = tpu.matmul %80, %81, %cst_66 {dimension_numbers = #tpu.dot_dimension_numbers<[1], [0], [0], [1], [0, 0, 1, 1], [], []>} : vector<32x32xf32>, vector<32x58xf32>, vector<32x58xf32> -> vector<32x58xf32>
    %83 = arith.addf %78, %82 : vector<32x58xf32>
    %c1_67 = arith.constant 1 : index
    %c2_68 = arith.constant 2 : index
    %c0_69 = arith.constant 0 : index
    %c0_70 = arith.constant 0 : index
    %84 = vector.load %arg6[%c1_67, %c2_68, %c0_69, %c0_70] : memref<2x3x32x32xf32, #tpu.memory_space<vmem>>, vector<1x1x32x32xf32>
    %85 = vector.shape_cast %84 : vector<1x1x32x32xf32> to vector<32x32xf32>
    %86 = vector.extract_strided_slice %72 {offsets = [0, 2], sizes = [32, 58], strides = [1, 1]} : vector<32x60xf32> to vector<32x58xf32>
    %cst_71 = arith.constant dense<0.000000e+00> : vector<32x58xf32>
    %87 = tpu.matmul %85, %86, %cst_71 {dimension_numbers = #tpu.dot_dimension_numbers<[1], [0], [0], [1], [0, 0, 1, 1], [], []>} : vector<32x32xf32>, vector<32x58xf32>, vector<32x58xf32> -> vector<32x58xf32>
    %88 = arith.addf %83, %87 : vector<32x58xf32>
    %89 = vector.broadcast %74 : vector<32x1xf32> to vector<32x58xf32>
    %90 = arith.addf %88, %89 : vector<32x58xf32>
    %cst_72 = arith.constant 0.00999999977 : f32
    %91 = vector.broadcast %cst_72 : f32 to vector<32x58xf32>
    %92 = arith.mulf %91, %90 : vector<32x58xf32>
    %93 = arith.maximumf %90, %92 : vector<32x58xf32>
    %94 = vector.extract_strided_slice %93 {offsets = [0, 0], sizes = [32, 57], strides = [1, 1]} : vector<32x58xf32> to vector<32x57xf32>
    %95 = vector.extract_strided_slice %93 {offsets = [0, 1], sizes = [32, 57], strides = [1, 1]} : vector<32x58xf32> to vector<32x57xf32>
    %96 = arith.maximumf %94, %95 : vector<32x57xf32>
    %c0_73 = arith.constant 0 : index
    %c0_74 = arith.constant 0 : index
    %97 = vector.load %arg10[%c0_73, %c0_74] : memref<57x28xf32, #tpu.memory_space<vmem>>, vector<57x28xf32>
    %cst_75 = arith.constant dense<0.000000e+00> : vector<32x28xf32>
    %98 = tpu.matmul %96, %97, %cst_75 {dimension_numbers = #tpu.dot_dimension_numbers<[1], [0], [0], [1], [0, 0, 1, 1], [], []>} : vector<32x57xf32>, vector<57x28xf32>, vector<32x28xf32> -> vector<32x28xf32>
    %c0_76 = arith.constant 0 : index
    %c0_77 = arith.constant 0 : index
    %c0_78 = arith.constant 0 : index
    %99 = vector.load %arg11[%c0_76, %c0_77, %c0_78] : memref<1x32x28xf32, #tpu.memory_space<vmem>>, vector<1x32x28xf32>
    %100 = vector.shape_cast %99 : vector<1x32x28xf32> to vector<32x28xf32>
    %101 = vector.shape_cast %98 : vector<32x28xf32> to vector<1x32x28xf32>
    tpu.vector_store %arg11[%c0_76, %c0_77, %c0_78], %101 {strides = array<i32>} : memref<1x32x28xf32, #tpu.memory_space<vmem>>, vector<1x32x28xf32>,
    return
  }
  func.func @transform_0(%arg0: i32) -> (i32, i32, i32) {
    %c0_i32 = arith.constant 0 : i32
    %c0_i32_0 = arith.constant 0 : i32
    %c0_i32_1 = arith.constant 0 : i32
    return %arg0, %c0_i32, %c0_i32_0 : i32, i32, i32
  }
  func.func @transform_1(%arg0: i32) -> (i32, i32, i32) {
    %c0_i32 = arith.constant 0 : i32
    %c0_i32_0 = arith.constant 0 : i32
    %c0_i32_1 = arith.constant 0 : i32
    %c0_i32_2 = arith.constant 0 : i32
    return %c0_i32, %c0_i32_0, %c0_i32_1 : i32, i32, i32
  }
  func.func @transform_2(%arg0: i32) -> (i32, i32) {
    %c0_i32 = arith.constant 0 : i32
    %c0_i32_0 = arith.constant 0 : i32
    %c0_i32_1 = arith.constant 0 : i32
    return %c0_i32, %c0_i32_0 : i32, i32
  }
  func.func @transform_3(%arg0: i32) -> (i32, i32, i32) {
    %c0_i32 = arith.constant 0 : i32
    %c0_i32_0 = arith.constant 0 : i32
    %c0_i32_1 = arith.constant 0 : i32
    %c0_i32_2 = arith.constant 0 : i32
    return %c0_i32, %c0_i32_0, %c0_i32_1 : i32, i32, i32
  }
  func.func @transform_4(%arg0: i32) -> (i32, i32) {
    %c0_i32 = arith.constant 0 : i32
    %c0_i32_0 = arith.constant 0 : i32
    %c0_i32_1 = arith.constant 0 : i32
    return %c0_i32, %c0_i32_0 : i32, i32
  }
  func.func @transform_5(%arg0: i32) -> (i32, i32, i32, i32) {
    %c0_i32 = arith.constant 0 : i32
    %c0_i32_0 = arith.constant 0 : i32
    %c0_i32_1 = arith.constant 0 : i32
    %c0_i32_2 = arith.constant 0 : i32
    %c0_i32_3 = arith.constant 0 : i32
    return %c0_i32, %c0_i32_0, %c0_i32_1, %c0_i32_2 : i32, i32, i32, i32
  }
  func.func @transform_6(%arg0: i32) -> (i32, i32, i32) {
    %c0_i32 = arith.constant 0 : i32
    %c0_i32_0 = arith.constant 0 : i32
    %c0_i32_1 = arith.constant 0 : i32
    %c0_i32_2 = arith.constant 0 : i32
    return %c0_i32, %c0_i32_0, %c0_i32_1 : i32, i32, i32
  }
  func.func @transform_7(%arg0: i32) -> (i32, i32) {
    %c0_i32 = arith.constant 0 : i32
    %c0_i32_0 = arith.constant 0 : i32
    %c0_i32_1 = arith.constant 0 : i32
    return %c0_i32, %c0_i32_0 : i32, i32
  }
  func.func @transform_8(%arg0: i32) -> (i32, i32) {
    %c0_i32 = arith.constant 0 : i32
    %c0_i32_0 = arith.constant 0 : i32
    %c0_i32_1 = arith.constant 0 : i32
    return %c0_i32, %c0_i32_0 : i32, i32
  }
  func.func @transform_9(%arg0: i32) -> (i32, i32) {
    %c0_i32 = arith.constant 0 : i32
    %c0_i32_0 = arith.constant 0 : i32
    %c0_i32_1 = arith.constant 0 : i32
    return %c0_i32, %c0_i32_0 : i32, i32
  }
  func.func @transform_10(%arg0: i32) -> (i32, i32, i32) {
    %c0_i32 = arith.constant 0 : i32
    %c0_i32_0 = arith.constant 0 : i32
    %c0_i32_1 = arith.constant 0 : i32
    return %arg0, %c0_i32, %c0_i32_0 : i32, i32, i32
  }
}

</mosaic_0001>

<llo_original>
// kernel: tpu_custom_call.1
$region0: #{tpu_custom_call.1}
  #allocation0 [shape = 'u32[]', space=smem, size = 0x4, offset = 0x4, fixed_abs, tag = 'smem constant byte address 0x4 - core index']
  #allocation1 [shape = 'u32[144,128]{1,0:T(1,128)}', space=vmem, size = 0x12000, scoped, tag = 'internal scratch']
  %s0 = inlined_call_operand.vmem [shape: f32[2,4,128], index: 0, kind: input, shape index: {}]
  %s1 = inlined_call_operand.vmem [shape: f32[3,32,4], index: 1, kind: input, shape index: {}]
  %s2 = inlined_call_operand.vmem [shape: f32[32,1], index: 2, kind: input, shape index: {}]
  %s3 = inlined_call_operand.vmem [shape: f32[3,32,32], index: 3, kind: input, shape index: {}]
  %s4 = inlined_call_operand.vmem [shape: f32[32,1], index: 4, kind: input, shape index: {}]
  %s5 = inlined_call_operand.vmem [shape: f32[2,3,32,32], index: 5, kind: input, shape index: {}]
  %s6 = inlined_call_operand.vmem [shape: f32[2,32,1], index: 6, kind: input, shape index: {}]
  %s7 = inlined_call_operand.vmem [shape: f32[1,126], index: 7, kind: input, shape index: {}]
  %s8 = inlined_call_operand.vmem [shape: f32[123,60], index: 8, kind: input, shape index: {}]
  %s9 = inlined_call_operand.vmem [shape: f32[57,28], index: 9, kind: input, shape index: {}]
  %s10 = inlined_call_operand.vmem [shape: f32[2,32,28], index: 10, kind: output, shape index: {}]
  %s11 = sld [smem:[#allocation0]]
  $region73: #{tpu_custom_call.1} parent=0
    _
  %s13 = ssub.s32 1, %s11
  %s14 = scalar_select 0, %s13, %s11
  loop: start=0, step=1, limit=4
  $region2: #{tpu_custom_call.1} parent=0 // loop_pre_header
    _
  $region3: #{tpu_custom_call.1} parent=0 // loop_header
    %s16 = sphi 0, %s20
    %p17 = scmp.ge.s32.totalorder %s16, 4
    %s26 = sphi 0, %s28
    %s29 = sphi 0, %s26
    %s30 = sphi 0, %s29
    %s46 = sphi 0, %s30
    %s50 = sphi 0, %s50
    %s52 = sphi 0, %s50
    %s53 = sphi 0, %s52
    %s67 = sphi 0, %s53
    %s71 = sphi 0, %s71
    %s73 = sphi 0, %s71
    %s74 = sphi 0, %s73
    %s88 = sphi 0, %s74
    %s92 = sphi 0, %s92
    %s94 = sphi 0, %s92
    %s95 = sphi 0, %s94
    %s109 = sphi 0, %s95
    %s113 = sphi 0, %s113
    %s115 = sphi 0, %s113
    %s116 = sphi 0, %s115
    %s130 = sphi 0, %s116
    %s134 = sphi 0, %s134
    %s136 = sphi 0, %s134
    %s137 = sphi 0, %s136
    %s151 = sphi 0, %s137
    %s155 = sphi 0, %s155
    %s157 = sphi 0, %s155
    %s158 = sphi 0, %s157
    %s172 = sphi 0, %s158
    %s176 = sphi 0, %s176
    %s178 = sphi 0, %s176
    %s179 = sphi 0, %s178
    %s193 = sphi 0, %s179
    %s197 = sphi 0, %s197
    %s199 = sphi 0, %s197
    %s200 = sphi 0, %s199
    %s214 = sphi 0, %s200
    %s218 = sphi 0, %s218
    %s220 = sphi 0, %s218
    %s221 = sphi 0, %s220
    %s235 = sphi 0, %s221
    %s241 = sphi 0, %s243
    %s244 = sphi 0, %s241
    %s245 = sphi 0, %s244
    %s261 = sphi 0, %s245
  $region4: #{tpu_custom_call.1} parent=0 // loop_header_branch
    %19 = sbr.rel (%p17) target = $region8
  $region5: #{tpu_custom_call.1} parent=0 // loop_body
    %s21 = ssub.s32 %s16, 1
    %s22 = ssub.s32 %s16, 2
    %s23 = sadd.s32 %s16, 1
    %s24 = ssub.s32 %s16, %s23
    %p25 = scmp.eq.s32.totalorder %s24, 0
    %s27 = sadd.s32 %s26, 1
    %s28 = scalar_select %p25, %s26, %s27
    %p31 = pneg %p25
    %p32 = scmp.eq.s32.totalorder %s16, 1
    %p33 = por %p31, %p32
    %p34 = scmp.ne.s32.totalorder %s26, %s29
    %p35 = scmp.eq.s32.totalorder %s16, 0
    %p36 = por %p34, %p35
    %p37 = scmp.ne.s32.totalorder %s26, %s29
    %p38 = scmp.eq.s32.totalorder %s21, 1
    %p39 = por %p37, %p38
    %p40 = scmp.ne.s32.totalorder %s29, %s30
    %p41 = scmp.eq.s32.totalorder %s21, 0
    %p42 = por %p40, %p41
    %p43 = scmp.ne.s32.totalorder %s29, %s30
    %p44 = scmp.eq.s32.totalorder %s22, 1
    %p45 = por %p43, %p44
    %p47 = scmp.ne.s32.totalorder %s30, %s46
    %p48 = scmp.eq.s32.totalorder %s22, 0
    %p49 = por %p47, %p48
    %s51 = sadd.s32 %s50, 1
    %p54 = scmp.eq.s32.totalorder %s16, 1
    %p55 = scmp.ne.s32.totalorder %s50, %s52
    %p56 = scmp.eq.s32.totalorder %s16, 0
    %p57 = por %p55, %p56
    %p58 = scmp.ne.s32.totalorder %s50, %s52
    %p59 = scmp.eq.s32.totalorder %s21, 1
    %p60 = por %p58, %p59
    %p61 = scmp.ne.s32.totalorder %s52, %s53
    %p62 = scmp.eq.s32.totalorder %s21, 0
    %p63 = por %p61, %p62
    %p64 = scmp.ne.s32.totalorder %s52, %s53
    %p65 = scmp.eq.s32.totalorder %s22, 1
    %p66 = por %p64, %p65
    %p68 = scmp.ne.s32.totalorder %s53, %s67
    %p69 = scmp.eq.s32.totalorder %s22, 0
    %p70 = por %p68, %p69
    %s72 = sadd.s32 %s71, 1
    %p75 = scmp.eq.s32.totalorder %s16, 1
    %p76 = scmp.ne.s32.totalorder %s71, %s73
    %p77 = scmp.eq.s32.totalorder %s16, 0
    %p78 = por %p76, %p77
    %p79 = scmp.ne.s32.totalorder %s71, %s73
    %p80 = scmp.eq.s32.totalorder %s21, 1
    %p81 = por %p79, %p80
    %p82 = scmp.ne.s32.totalorder %s73, %s74
    %p83 = scmp.eq.s32.totalorder %s21, 0
    %p84 = por %p82, %p83
    %p85 = scmp.ne.s32.totalorder %s73, %s74
    %p86 = scmp.eq.s32.totalorder %s22, 1
    %p87 = por %p85, %p86
    %p89 = scmp.ne.s32.totalorder %s74, %s88
    %p90 = scmp.eq.s32.totalorder %s22, 0
    %p91 = por %p89, %p90
    %s93 = sadd.s32 %s92, 1
    %p96 = scmp.eq.s32.totalorder %s16, 1
    %p97 = scmp.ne.s32.totalorder %s92, %s94
    %p98 = scmp.eq.s32.totalorder %s16, 0
    %p99 = por %p97, %p98
    %p100 = scmp.ne.s32.totalorder %s92, %s94
    %p101 = scmp.eq.s32.totalorder %s21, 1
    %p102 = por %p100, %p101
    %p103 = scmp.ne.s32.totalorder %s94, %s95
    %p104 = scmp.eq.s32.totalorder %s21, 0
    %p105 = por %p103, %p104
    %p106 = scmp.ne.s32.totalorder %s94, %s95
    %p107 = scmp.eq.s32.totalorder %s22, 1
    %p108 = por %p106, %p107
    %p110 = scmp.ne.s32.totalorder %s95, %s109
    %p111 = scmp.eq.s32.totalorder %s22, 0
    %p112 = por %p110, %p111
    %s114 = sadd.s32 %s113, 1
    %p117 = scmp.eq.s32.totalorder %s16, 1
    %p118 = scmp.ne.s32.totalorder %s113, %s115
    %p119 = scmp.eq.s32.totalorder %s16, 0
    %p120 = por %p118, %p119
    %p121 = scmp.ne.s32.totalorder %s113, %s115
    %p122 = scmp.eq.s32.totalorder %s21, 1
    %p123 = por %p121, %p122
    %p124 = scmp.ne.s32.totalorder %s115, %s116
    %p125 = scmp.eq.s32.totalorder %s21, 0
    %p126 = por %p124, %p125
    %p127 = scmp.ne.s32.totalorder %s115, %s116
    %p128 = scmp.eq.s32.totalorder %s22, 1
    %p129 = por %p127, %p128
    %p131 = scmp.ne.s32.totalorder %s116, %s130
    %p132 = scmp.eq.s32.totalorder %s22, 0
    %p133 = por %p131, %p132
    %s135 = sadd.s32 %s134, 1
    %p138 = scmp.eq.s32.totalorder %s16, 1
    %p139 = scmp.ne.s32.totalorder %s134, %s136
    %p140 = scmp.eq.s32.totalorder %s16, 0
    %p141 = por %p139, %p140
    %p142 = scmp.ne.s32.totalorder %s134, %s136
    %p143 = scmp.eq.s32.totalorder %s21, 1
    %p144 = por %p142, %p143
    %p145 = scmp.ne.s32.totalorder %s136, %s137
    %p146 = scmp.eq.s32.totalorder %s21, 0
    %p147 = por %p145, %p146
    %p148 = scmp.ne.s32.totalorder %s136, %s137
    %p149 = scmp.eq.s32.totalorder %s22, 1
    %p150 = por %p148, %p149
    %p152 = scmp.ne.s32.totalorder %s137, %s151
    %p153 = scmp.eq.s32.totalorder %s22, 0
    %p154 = por %p152, %p153
    %s156 = sadd.s32 %s155, 1
    %p159 = scmp.eq.s32.totalorder %s16, 1
    %p160 = scmp.ne.s32.totalorder %s155, %s157
    %p161 = scmp.eq.s32.totalorder %s16, 0
    %p162 = por %p160, %p161
    %p163 = scmp.ne.s32.totalorder %s155, %s157
    %p164 = scmp.eq.s32.totalorder %s21, 1
    %p165 = por %p163, %p164
    %p166 = scmp.ne.s32.totalorder %s157, %s158
    %p167 = scmp.eq.s32.totalorder %s21, 0
    %p168 = por %p166, %p167
    %p169 = scmp.ne.s32.totalorder %s157, %s158
    %p170 = scmp.eq.s32.totalorder %s22, 1
    %p171 = por %p169, %p170
    %p173 = scmp.ne.s32.totalorder %s158, %s172
    %p174 = scmp.eq.s32.totalorder %s22, 0
    %p175 = por %p173, %p174
    %s177 = sadd.s32 %s176, 1
    %p180 = scmp.eq.s32.totalorder %s16, 1
    %p181 = scmp.ne.s32.totalorder %s176, %s178
    %p182 = scmp.eq.s32.totalorder %s16, 0
    %p183 = por %p181, %p182
    %p184 = scmp.ne.s32.totalorder %s176, %s178
    %p185 = scmp.eq.s32.totalorder %s21, 1
    %p186 = por %p184, %p185
    %p187 = scmp.ne.s32.totalorder %s178, %s179
    %p188 = scmp.eq.s32.totalorder %s21, 0
    %p189 = por %p187, %p188
    %p190 = scmp.ne.s32.totalorder %s178, %s179
    %p191 = scmp.eq.s32.totalorder %s22, 1
    %p192 = por %p190, %p191
    %p194 = scmp.ne.s32.totalorder %s179, %s193
    %p195 = scmp.eq.s32.totalorder %s22, 0
    %p196 = por %p194, %p195
    %s198 = sadd.s32 %s197, 1
    %p201 = scmp.eq.s32.totalorder %s16, 1
    %p202 = scmp.ne.s32.totalorder %s197, %s199
    %p203 = scmp.eq.s32.totalorder %s16, 0
    %p204 = por %p202, %p203
    %p205 = scmp.ne.s32.totalorder %s197, %s199
    %p206 = scmp.eq.s32.totalorder %s21, 1
    %p207 = por %p205, %p206
    %p208 = scmp.ne.s32.totalorder %s199, %s200
    %p209 = scmp.eq.s32.totalorder %s21, 0
    %p210 = por %p208, %p209
    %p211 = scmp.ne.s32.totalorder %s199, %s200
    %p212 = scmp.eq.s32.totalorder %s22, 1
    %p213 = por %p211, %p212
    %p215 = scmp.ne.s32.totalorder %s200, %s214
    %p216 = scmp.eq.s32.totalorder %s22, 0
    %p217 = por %p215, %p216
    %s219 = sadd.s32 %s218, 1
    %p222 = scmp.eq.s32.totalorder %s16, 1
    %p223 = scmp.ne.s32.totalorder %s218, %s220
    %p224 = scmp.eq.s32.totalorder %s16, 0
    %p225 = por %p223, %p224
    %p226 = scmp.ne.s32.totalorder %s218, %s220
    %p227 = scmp.eq.s32.totalorder %s21, 1
    %p228 = por %p226, %p227
    %p229 = scmp.ne.s32.totalorder %s220, %s221
    %p230 = scmp.eq.s32.totalorder %s21, 0
    %p231 = por %p229, %p230
    %p232 = scmp.ne.s32.totalorder %s220, %s221
    %p233 = scmp.eq.s32.totalorder %s22, 1
    %p234 = por %p232, %p233
    %p236 = scmp.ne.s32.totalorder %s221, %s235
    %p237 = scmp.eq.s32.totalorder %s22, 0
    %p238 = por %p236, %p237
    %s239 = ssub.s32 %s16, %s23
    %p240 = scmp.eq.s32.totalorder %s239, 0
    %s242 = sadd.s32 %s241, 1
    %s243 = scalar_select %p240, %s241, %s242
    %p246 = pneg %p240
    %p247 = scmp.eq.s32.totalorder %s16, 1
    %p248 = por %p246, %p247
    %p249 = scmp.ne.s32.totalorder %s241, %s244
    %p250 = scmp.eq.s32.totalorder %s16, 0
    %p251 = por %p249, %p250
    %p252 = scmp.ne.s32.totalorder %s241, %s244
    %p253 = scmp.eq.s32.totalorder %s21, 1
    %p254 = por %p252, %p253
    %p255 = scmp.ne.s32.totalorder %s244, %s245
    %p256 = scmp.eq.s32.totalorder %s21, 0
    %p257 = por %p255, %p256
    %p258 = scmp.ne.s32.totalorder %s244, %s245
    %p259 = scmp.eq.s32.totalorder %s22, 1
    %p260 = por %p258, %p259
    %p262 = scmp.ne.s32.totalorder %s245, %s261
    %p263 = scmp.eq.s32.totalorder %s22, 0
    %p264 = por %p262, %p263
    %p265 = scmp.le.s32.totalorder 1, %s16
    %p266 = scmp.lt.s32.totalorder %s16, 3
    %p267 = pnand %p265, %p266
    %p268 = pneg %p267
    // Predicated region
    $region9: #{tpu_custom_call.1} parent=5 // pred_check
      _
    $region10: #{tpu_custom_call.1} parent=5 // pred_check_branch
      %270 = sbr.rel (%p267) target = $region12
    $region11: #{tpu_custom_call.1} parent=5 // pred_region
      %s271 = ssub.s32 %s16, 1
      // Predicated region
      $region13: #{tpu_custom_call.1} parent=11 // pred_check
        %p272 = pneg %p63
      $region14: #{tpu_custom_call.1} parent=11 // pred_check_branch
        %274 = sbr.rel (%p272) target = $region16
      $region15: #{tpu_custom_call.1} parent=11 // pred_region
        _
      $region16: #{tpu_custom_call.1} parent=11 // pred_fallthru
        _
      // Predicated region
      $region17: #{tpu_custom_call.1} parent=11 // pred_check
        %p275 = pneg %p84
      $region18: #{tpu_custom_call.1} parent=11 // pred_check_branch
        %277 = sbr.rel (%p275) target = $region20
      $region19: #{tpu_custom_call.1} parent=11 // pred_region
        _
      $region20: #{tpu_custom_call.1} parent=11 // pred_fallthru
        _
      // Predicated region
      $region21: #{tpu_custom_call.1} parent=11 // pred_check
        %p278 = pneg %p105
      $region22: #{tpu_custom_call.1} parent=11 // pred_check_branch
        %280 = sbr.rel (%p278) target = $region24
      $region23: #{tpu_custom_call.1} parent=11 // pred_region
        _
      $region24: #{tpu_custom_call.1} parent=11 // pred_fallthru
        _
      // Predicated region
      $region25: #{tpu_custom_call.1} parent=11 // pred_check
        %p281 = pneg %p126
      $region26: #{tpu_custom_call.1} parent=11 // pred_check_branch
        %283 = sbr.rel (%p281) target = $region28
      $region27: #{tpu_custom_call.1} parent=11 // pred_region
        _
      $region28: #{tpu_custom_call.1} parent=11 // pred_fallthru
        _
      // Predicated region
      $region29: #{tpu_custom_call.1} parent=11 // pred_check
        %p284 = pneg %p147
      $region30: #{tpu_custom_call.1} parent=11 // pred_check_branch
        %286 = sbr.rel (%p284) target = $region32
      $region31: #{tpu_custom_call.1} parent=11 // pred_region
        _
      $region32: #{tpu_custom_call.1} parent=11 // pred_fallthru
        _
      // Predicated region
      $region33: #{tpu_custom_call.1} parent=11 // pred_check
        %p287 = pneg %p168
      $region34: #{tpu_custom_call.1} parent=11 // pred_check_branch
        %289 = sbr.rel (%p287) target = $region36
      $region35: #{tpu_custom_call.1} parent=11 // pred_region
        _
      $region36: #{tpu_custom_call.1} parent=11 // pred_fallthru
        _
      // Predicated region
      $region37: #{tpu_custom_call.1} parent=11 // pred_check
        %p290 = pneg %p189
      $region38: #{tpu_custom_call.1} parent=11 // pred_check_branch
        %292 = sbr.rel (%p290) target = $region40
      $region39: #{tpu_custom_call.1} parent=11 // pred_region
        _
      $region40: #{tpu_custom_call.1} parent=11 // pred_fallthru
        _
      // Predicated region
      $region41: #{tpu_custom_call.1} parent=11 // pred_check
        %p293 = pneg %p210
      $region42: #{tpu_custom_call.1} parent=11 // pred_check_branch
        %295 = sbr.rel (%p293) target = $region44
      $region43: #{tpu_custom_call.1} parent=11 // pred_region
        _
      $region44: #{tpu_custom_call.1} parent=11 // pred_fallthru
        _
      // Predicated region
      $region45: #{tpu_custom_call.1} parent=11 // pred_check
        %p296 = pneg %p231
      $region46: #{tpu_custom_call.1} parent=11 // pred_check_branch
        %298 = sbr.rel (%p296) target = $region48
      $region47: #{tpu_custom_call.1} parent=11 // pred_region
        _
      $region48: #{tpu_custom_call.1} parent=11 // pred_fallthru
        _
    $region12: #{tpu_custom_call.1} parent=5 // pred_fallthru
      _
    %p299 = scmp.lt.s32.totalorder %s16, 2
    // Predicated region
    $region49: #{tpu_custom_call.1} parent=5 // pred_check
      %p300 = pneg %p299
    $region50: #{tpu_custom_call.1} parent=5 // pred_check_branch
      %302 = sbr.rel (%p300) target = $region52
    $region51: #{tpu_custom_call.1} parent=5 // pred_region
      // Predicated region
      $region53: #{tpu_custom_call.1} parent=51 // pred_check
        %p303 = pneg %p36
      $region54: #{tpu_custom_call.1} parent=51 // pred_check_branch
        %305 = sbr.rel (%p303) target = $region56
      $region55: #{tpu_custom_call.1} parent=51 // pred_region
        %p306 = scmp.lt.s32.totalorder %s16, 1
        %s307 = scalar_select %p306, %s16, 1
        %s308 = smul.addr %s307, 4
        %s309 = scalar_lea.vmem %s0, %s308
      $region56: #{tpu_custom_call.1} parent=51 // pred_fallthru
        _
    $region52: #{tpu_custom_call.1} parent=5 // pred_fallthru
      _
    %p310 = scmp.le.s32.totalorder 1, %s16
    %p311 = scmp.lt.s32.totalorder %s16, 3
    %p312 = pnand %p310, %p311
    %p313 = pneg %p312
    // Predicated region
    $region57: #{tpu_custom_call.1} parent=5 // pred_check
      _
    $region58: #{tpu_custom_call.1} parent=5 // pred_check_branch
      %315 = sbr.rel (%p312) target = $region60
    $region59: #{tpu_custom_call.1} parent=5 // pred_region
      %s316 = ssub.s32 %s16, 1
      %p317 = scmp.lt.s32.totalorder %s21, 1
      %s318 = scalar_select %p317, %s21, 1
      %s319 = smul.addr %s318, 4
      %s320 = scalar_lea.vmem %s0, %s319
      %p321 = pneg %p42
      %p322 = pneg %p39
      %p323 = pneg %p63
      %p324 = pneg %p60
      %p325 = pneg %p84
      %p326 = pneg %p81
      %p327 = pneg %p105
      %p328 = pneg %p102
      %p329 = pneg %p126
      %p330 = pneg %p123
      %p331 = pneg %p147
      %p332 = pneg %p144
      %p333 = pneg %p168
      %p334 = pneg %p165
      %p335 = pneg %p189
      %p336 = pneg %p186
      %p337 = pneg %p210
      %p338 = pneg %p207
      %p339 = pneg %p231
      %p340 = pneg %p228
      %p341 = pneg %p257
      %p342 = pneg %p254
      %p343 = scmp.lt.s32.totalorder %s21, 1
      %s344 = scalar_select %p343, %s21, 1
      %s345 = smul.addr %s344, 4
      %s346 = smul.addr %s345, 8
      %s347 = scalar_lea.vmem %s10, %s346
      %p348 = scmp.lt.s32.totalorder %s21, 1
      %s349 = scalar_select %p348, %s21, 1
      %s350 = smul.addr %s349, 4
      %s351 = scalar_lea.vmem %s0, %s350
      %p352 = scmp.lt.s32.totalorder %s21, 1
      %s353 = scalar_select %p352, %s21, 1
      %s354 = smul.addr %s353, 4
      %s355 = smul.addr %s354, 8
      %s356 = scalar_lea.vmem %s10, %s355
      %v357 = vld [vmem:[%s351] sm:$0xf]
      %v358 = vld [vmem:[%s2] sm:$0xff]
      %v359 = vld [vmem:[%s2 + $0x8] sm:$0xff]
      %v360 = vld [vmem:[%s2 + $0x10] sm:$0xff]
      %v361 = vld [vmem:[%s2 + $0x18] sm:$0xff]
      %v362 = vld [vmem:[%s1] sm:$0xff]
      %v363 = vld [vmem:[%s1 + $0x8] sm:$0xff]
      %v364 = vld [vmem:[%s1 + $0x10] sm:$0xff]
      %v365 = vld [vmem:[%s1 + $0x18] sm:$0xff]
      %s366 = scalar_lea.vmem %s1, 32
      %v367 = vld [vmem:[%s366] sm:$0xff]
      %v368 = vld [vmem:[%s366 + $0x8] sm:$0xff]
      %v369 = vld [vmem:[%s366 + $0x10] sm:$0xff]
      %v370 = vld [vmem:[%s366 + $0x18] sm:$0xff]
      %372 = vrot.lane.b32.xlu0 %v357, 127
      %v373 = vpop.permute.xlu0 %372
      %vm374 = vcmask 31744
      %v376 = vsel %vm374, %v367, 0
      %v379 = vsel %vm374, %v368, 0
      %v382 = vsel %vm374, %v369, 0
      %v385 = vsel %vm374, %v370, 0
      %vm387 = vcmask 1043456
      %v388 = vsel %vm387, %v373, 0
      %390 = vmatprep.subr.mxu0 0.0
      %391 = vmatpush1.msra.mxu0 0.0
      %392 = vmatprep.subr.mxu0 0.0
      %393 = vmatpush1.msra.mxu0 0.0
      %394 = vmatprep.subr.mxu0 0.0
      %395 = vmatpush1.msra.mxu0 0.0
      %396 = vmatprep.subr.mxu0 0.0
      %397 = vmatpush1.msra.mxu0 0.0
      %398 = vmatprep.subr.mxu0 0.0
      %399 = vmatpush1.msra.mxu0 0.0
      %400 = vmatprep.subr.mxu0 0.0
      %401 = vmatpush1.msra.mxu0 0.0
      %402 = vmatprep.subr.mxu0 0.0
      %403 = vmatpush1.msra.mxu0 0.0
      %404 = vmatprep.subr.mxu0 0.0
      %405 = vmatpush1.msra.mxu0 0.0
      %406 = vmatprep.subr.mxu0 0.0
      %407 = vmatpush1.msra.mxu0 0.0
      %408 = vmatprep.subr.mxu0 0.0
      %409 = vmatpush1.msra.mxu0 0.0
      %410 = vmatprep.subr.mxu0 0.0
      %411 = vmatpush1.msra.mxu0 0.0
      %412 = vmatprep.subr.mxu0 0.0
      %413 = vmatpush1.msra.mxu0 0.0
      %414 = vmatprep.subr.mxu0 0.0
      %415 = vmatpush1.msra.mxu0 0.0
      %416 = vmatprep.subr.mxu0 0.0
      %417 = vmatpush1.msra.mxu0 0.0
      %418 = vmatprep.subr.mxu0 0.0
      %419 = vmatpush1.msra.mxu0 0.0
      %420 = vmatprep.subr.mxu0 0.0
      %421 = vmatpush1.msra.mxu0 %v388
      %422 = vmatprep.subr.mxu0 0.0
      %423 = vmatpush2.msra.mxu0 0.0
      %424 = vmatprep.subr.mxu0 0.0
      %425 = vmatpush2.msra.mxu0 0.0
      %426 = vmatprep.subr.mxu0 0.0
      %427 = vmatpush2.msra.mxu0 0.0
      %428 = vmatprep.subr.mxu0 0.0
      %429 = vmatpush2.msra.mxu0 0.0
      %430 = vmatprep.subr.mxu0 0.0
      %431 = vmatpush2.msra.mxu0 0.0
      %432 = vmatprep.subr.mxu0 0.0
      %433 = vmatpush2.msra.mxu0 0.0
      %434 = vmatprep.subr.mxu0 0.0
      %435 = vmatpush2.msra.mxu0 0.0
      %436 = vmatprep.subr.mxu0 0.0
      %437 = vmatpush2.msra.mxu0 0.0
      %438 = vmatprep.subr.mxu0 0.0
      %439 = vmatpush2.msra.mxu0 0.0
      %440 = vmatprep.subr.mxu0 0.0
      %441 = vmatpush2.msra.mxu0 0.0
      %442 = vmatprep.subr.mxu0 0.0
      %443 = vmatpush2.msra.mxu0 0.0
      %444 = vmatprep.subr.mxu0 0.0
      %445 = vmatpush2.msra.mxu0 0.0
      %446 = vmatprep.subr.mxu0 0.0
      %447 = vmatpush2.msra.mxu0 0.0
      %448 = vmatprep.subr.mxu0 0.0
      %449 = vmatpush2.msra.mxu0 0.0
      %450 = vmatprep.subr.mxu0 0.0
      %451 = vmatpush2.msra.mxu0 0.0
      %452 = vmatprep.subr.mxu0 0.0
      %453 = vmatpush2.msra.mxu0 0.0
      %454 = vmatprep.mubr.f32.mxu0 0.0
      %455 = vmatmul.mubr.f32.gmra.mxu0 %v376
      %v456 = vpop.f32.mrf.mxu0
      %v457 = vadd.f32 0.0, %v456
      %v458 = vpop.f32.mrf.mxu0
      %459 = vmatprep.mubr.f32.mxu0 0.0
      %460 = vmatmul.mubr.f32.gmra.mxu0 %v379
      %v461 = vpop.f32.mrf.mxu0
      %v462 = vadd.f32 0.0, %v461
      %v463 = vpop.f32.mrf.mxu0
      %464 = vmatprep.mubr.f32.mxu0 0.0
      %465 = vmatmul.mubr.f32.gmra.mxu0 %v382
      %v466 = vpop.f32.mrf.mxu0
      %v467 = vadd.f32 0.0, %v466
      %v468 = vpop.f32.mrf.mxu0
      %469 = vmatprep.mubr.f32.mxu0 0.0
      %470 = vmatmul.mubr.f32.gmra.mxu0 %v385
      %v471 = vpop.f32.mrf.mxu0
      %v472 = vadd.f32 0.0, %v471
      %v473 = vpop.f32.mrf.mxu0
      %474 = vdwg.mxu0
      %v476 = vsel %vm374, %v362, 0
      %v479 = vsel %vm374, %v363, 0
      %v482 = vsel %vm374, %v364, 0
      %v485 = vsel %vm374, %v365, 0
      %v487 = vsel %vm387, %v357, 0
      %489 = vmatprep.subr.mxu0 0.0
      %490 = vmatpush1.msra.mxu0 0.0
      %491 = vmatprep.subr.mxu0 0.0
      %492 = vmatpush1.msra.mxu0 0.0
      %493 = vmatprep.subr.mxu0 0.0
      %494 = vmatpush1.msra.mxu0 0.0
      %495 = vmatprep.subr.mxu0 0.0
      %496 = vmatpush1.msra.mxu0 0.0
      %497 = vmatprep.subr.mxu0 0.0
      %498 = vmatpush1.msra.mxu0 0.0
      %499 = vmatprep.subr.mxu0 0.0
      %500 = vmatpush1.msra.mxu0 0.0
      %501 = vmatprep.subr.mxu0 0.0
      %502 = vmatpush1.msra.mxu0 0.0
      %503 = vmatprep.subr.mxu0 0.0
      %504 = vmatpush1.msra.mxu0 0.0
      %505 = vmatprep.subr.mxu0 0.0
      %506 = vmatpush1.msra.mxu0 0.0
      %507 = vmatprep.subr.mxu0 0.0
      %508 = vmatpush1.msra.mxu0 0.0
      %509 = vmatprep.subr.mxu0 0.0
      %510 = vmatpush1.msra.mxu0 0.0
      %511 = vmatprep.subr.mxu0 0.0
      %512 = vmatpush1.msra.mxu0 0.0
      %513 = vmatprep.subr.mxu0 0.0
      %514 = vmatpush1.msra.mxu0 0.0
      %515 = vmatprep.subr.mxu0 0.0
      %516 = vmatpush1.msra.mxu0 0.0
      %517 = vmatprep.subr.mxu0 0.0
      %518 = vmatpush1.msra.mxu0 0.0
      %519 = vmatprep.subr.mxu0 0.0
      %520 = vmatpush1.msra.mxu0 %v487
      %521 = vmatprep.subr.mxu0 0.0
      %522 = vmatpush2.msra.mxu0 0.0
      %523 = vmatprep.subr.mxu0 0.0
      %524 = vmatpush2.msra.mxu0 0.0
      %525 = vmatprep.subr.mxu0 0.0
      %526 = vmatpush2.msra.mxu0 0.0
      %527 = vmatprep.subr.mxu0 0.0
      %528 = vmatpush2.msra.mxu0 0.0
      %529 = vmatprep.subr.mxu0 0.0
      %530 = vmatpush2.msra.mxu0 0.0
      %531 = vmatprep.subr.mxu0 0.0
      %532 = vmatpush2.msra.mxu0 0.0
      %533 = vmatprep.subr.mxu0 0.0
      %534 = vmatpush2.msra.mxu0 0.0
      %535 = vmatprep.subr.mxu0 0.0
      %536 = vmatpush2.msra.mxu0 0.0
      %537 = vmatprep.subr.mxu0 0.0
      %538 = vmatpush2.msra.mxu0 0.0
      %539 = vmatprep.subr.mxu0 0.0
      %540 = vmatpush2.msra.mxu0 0.0
      %541 = vmatprep.subr.mxu0 0.0
      %542 = vmatpush2.msra.mxu0 0.0
      %543 = vmatprep.subr.mxu0 0.0
      %544 = vmatpush2.msra.mxu0 0.0
      %545 = vmatprep.subr.mxu0 0.0
      %546 = vmatpush2.msra.mxu0 0.0
      %547 = vmatprep.subr.mxu0 0.0
      %548 = vmatpush2.msra.mxu0 0.0
      %549 = vmatprep.subr.mxu0 0.0
      %550 = vmatpush2.msra.mxu0 0.0
      %551 = vmatprep.subr.mxu0 0.0
      %552 = vmatpush2.msra.mxu0 0.0
      %553 = vmatprep.mubr.f32.mxu0 0.0
      %554 = vmatmul.mubr.f32.gmra.mxu0 %v476
      %v555 = vpop.f32.mrf.mxu0
      %v556 = vadd.f32 %v457, %v555
      %v557 = vpop.f32.mrf.mxu0
      %558 = vmatprep.mubr.f32.mxu0 0.0
      %559 = vmatmul.mubr.f32.gmra.mxu0 %v479
      %v560 = vpop.f32.mrf.mxu0
      %v561 = vadd.f32 %v462, %v560
      %v562 = vpop.f32.mrf.mxu0
      %563 = vmatprep.mubr.f32.mxu0 0.0
      %564 = vmatmul.mubr.f32.gmra.mxu0 %v482
      %v565 = vpop.f32.mrf.mxu0
      %v566 = vadd.f32 %v467, %v565
      %v567 = vpop.f32.mrf.mxu0
      %568 = vmatprep.mubr.f32.mxu0 0.0
      %569 = vmatmul.mubr.f32.gmra.mxu0 %v485
      %v570 = vpop.f32.mrf.mxu0
      %v571 = vadd.f32 %v472, %v570
      %v572 = vpop.f32.mrf.mxu0
      %573 = vdwg.mxu0
      %s574 = scalar_lea.vmem %s1, 64
      %v575 = vld [vmem:[%s574] sm:$0xff]
      %v576 = vld [vmem:[%s574 + $0x8] sm:$0xff]
      %v577 = vld [vmem:[%s574 + $0x10] sm:$0xff]
      %v578 = vld [vmem:[%s574 + $0x18] sm:$0xff]
      %579 = vrot.lane.b32.xlu0 %v357, 126
      %v580 = vpop.permute.xlu0 %579
      %v582 = vsel %vm374, %v575, 0
      %v585 = vsel %vm374, %v576, 0
      %v588 = vsel %vm374, %v577, 0
      %v591 = vsel %vm374, %v578, 0
      %v593 = vsel %vm387, %v580, 0
      %595 = vmatprep.subr.mxu0 0.0
      %596 = vmatpush1.msra.mxu0 0.0
      %597 = vmatprep.subr.mxu0 0.0
      %598 = vmatpush1.msra.mxu0 0.0
      %599 = vmatprep.subr.mxu0 0.0
      %600 = vmatpush1.msra.mxu0 0.0
      %601 = vmatprep.subr.mxu0 0.0
      %602 = vmatpush1.msra.mxu0 0.0
      %603 = vmatprep.subr.mxu0 0.0
      %604 = vmatpush1.msra.mxu0 0.0
      %605 = vmatprep.subr.mxu0 0.0
      %606 = vmatpush1.msra.mxu0 0.0
      %607 = vmatprep.subr.mxu0 0.0
      %608 = vmatpush1.msra.mxu0 0.0
      %609 = vmatprep.subr.mxu0 0.0
      %610 = vmatpush1.msra.mxu0 0.0
      %611 = vmatprep.subr.mxu0 0.0
      %612 = vmatpush1.msra.mxu0 0.0
      %613 = vmatprep.subr.mxu0 0.0
      %614 = vmatpush1.msra.mxu0 0.0
      %615 = vmatprep.subr.mxu0 0.0
      %616 = vmatpush1.msra.mxu0 0.0
      %617 = vmatprep.subr.mxu0 0.0
      %618 = vmatpush1.msra.mxu0 0.0
      %619 = vmatprep.subr.mxu0 0.0
      %620 = vmatpush1.msra.mxu0 0.0
      %621 = vmatprep.subr.mxu0 0.0
      %622 = vmatpush1.msra.mxu0 0.0
      %623 = vmatprep.subr.mxu0 0.0
      %624 = vmatpush1.msra.mxu0 0.0
      %625 = vmatprep.subr.mxu0 0.0
      %626 = vmatpush1.msra.mxu0 %v593
      %627 = vmatprep.subr.mxu0 0.0
      %628 = vmatpush2.msra.mxu0 0.0
      %629 = vmatprep.subr.mxu0 0.0
      %630 = vmatpush2.msra.mxu0 0.0
      %631 = vmatprep.subr.mxu0 0.0
      %632 = vmatpush2.msra.mxu0 0.0
      %633 = vmatprep.subr.mxu0 0.0
      %634 = vmatpush2.msra.mxu0 0.0
      %635 = vmatprep.subr.mxu0 0.0
      %636 = vmatpush2.msra.mxu0 0.0
      %637 = vmatprep.subr.mxu0 0.0
      %638 = vmatpush2.msra.mxu0 0.0
      %639 = vmatprep.subr.mxu0 0.0
      %640 = vmatpush2.msra.mxu0 0.0
      %641 = vmatprep.subr.mxu0 0.0
      %642 = vmatpush2.msra.mxu0 0.0
      %643 = vmatprep.subr.mxu0 0.0
      %644 = vmatpush2.msra.mxu0 0.0
      %645 = vmatprep.subr.mxu0 0.0
      %646 = vmatpush2.msra.mxu0 0.0
      %647 = vmatprep.subr.mxu0 0.0
      %648 = vmatpush2.msra.mxu0 0.0
      %649 = vmatprep.subr.mxu0 0.0
      %650 = vmatpush2.msra.mxu0 0.0
      %651 = vmatprep.subr.mxu0 0.0
      %652 = vmatpush2.msra.mxu0 0.0
      %653 = vmatprep.subr.mxu0 0.0
      %654 = vmatpush2.msra.mxu0 0.0
      %655 = vmatprep.subr.mxu0 0.0
      %656 = vmatpush2.msra.mxu0 0.0
      %657 = vmatprep.subr.mxu0 0.0
      %658 = vmatpush2.msra.mxu0 0.0
      %659 = vmatprep.mubr.f32.mxu0 0.0
      %660 = vmatmul.mubr.f32.gmra.mxu0 %v582
      %v661 = vpop.f32.mrf.mxu0
      %v662 = vadd.f32 0.0, %v661
      %v663 = vpop.f32.mrf.mxu0
      %664 = vmatprep.mubr.f32.mxu0 0.0
      %665 = vmatmul.mubr.f32.gmra.mxu0 %v585
      %v666 = vpop.f32.mrf.mxu0
      %v667 = vadd.f32 0.0, %v666
      %v668 = vpop.f32.mrf.mxu0
      %669 = vmatprep.mubr.f32.mxu0 0.0
      %670 = vmatmul.mubr.f32.gmra.mxu0 %v588
      %v671 = vpop.f32.mrf.mxu0
      %v672 = vadd.f32 0.0, %v671
      %v673 = vpop.f32.mrf.mxu0
      %674 = vmatprep.mubr.f32.mxu0 0.0
      %675 = vmatmul.mubr.f32.gmra.mxu0 %v591
      %v676 = vpop.f32.mrf.mxu0
      %v677 = vadd.f32 0.0, %v676
      %v678 = vpop.f32.mrf.mxu0
      %679 = vdwg.mxu0
      %v680 = vadd.f32 %v556, %v662
      %v681 = vadd.f32 %v561, %v667
      %v682 = vadd.f32 %v566, %v672
      %v683 = vadd.f32 %v571, %v677
      %685 = vset.pattern.permute.xlu0 0
      %686 = vperm.xlu0 %685, %v358
      %v687 = vpop.permute.xlu0 %686
      %690 = vset.pattern.permute.xlu0 0
      %691 = vperm.xlu0 %690, %v359
      %v692 = vpop.permute.xlu0 %691
      %695 = vset.pattern.permute.xlu0 0
      %696 = vperm.xlu0 %695, %v360
      %v697 = vpop.permute.xlu0 %696
      %700 = vset.pattern.permute.xlu0 0
      %701 = vperm.xlu0 %700, %v361
      %v702 = vpop.permute.xlu0 %701
      %v704 = vadd.f32 %v680, %v687
      %v705 = vadd.f32 %v681, %v692
      %v706 = vadd.f32 %v682, %v697
      %v707 = vadd.f32 %v683, %v702
      %v708 = vmul.f32 %v704, 0.01
      %v709 = vmul.f32 %v705, 0.01
      %v710 = vmul.f32 %v706, 0.01
      %v711 = vmul.f32 %v707, 0.01
      %v712 = vmax.f32 %v704, %v708
      %v713 = vmax.f32 %v705, %v709
      %v714 = vmax.f32 %v706, %v710
      %v715 = vmax.f32 %v707, %v711
      %v716 = vld [vmem:[%s7] sm:$0x1]
      %v718 = vlaneseq
      %v719 = vshrl.u32 %v718, 7
      %v720 = vsub.s32 0, %v719
      %v721 = vrot.slane %v716, %v720
      %v723 = vmul.f32 %v712, %v721
      %v724 = vmul.f32 %v713, %v721
      %v725 = vmul.f32 %v714, %v721
      %v726 = vmul.f32 %v715, %v721
      %731 = vrot.lane.b32.xlu0 %v723, 1
      %v732 = vpop.permute.xlu0 %731
      %733 = vrot.lane.b32.xlu0 %v724, 1
      %v734 = vpop.permute.xlu0 %733
      %735 = vrot.lane.b32.xlu0 %v725, 1
      %v736 = vpop.permute.xlu0 %735
      %737 = vrot.lane.b32.xlu0 %v726, 1
      %v738 = vpop.permute.xlu0 %737
      %vm743 = vcmask 7168
      %v744 = vsel %vm743, 0.0, %v732
      %v745 = vsel %vm743, 0.0, %v734
      %v746 = vsel %vm743, 0.0, %v736
      %v747 = vsel %vm743, 0.0, %v738
      %vm748 = vcmask 1039360
      %v749 = vsel %vm748, %v744, 0.0
      %v750 = vsel %vm748, %v745, 0.0
      %v751 = vsel %vm748, %v746, 0.0
      %v752 = vsel %vm748, %v747, 0.0
      %v753 = vld [vmem:[%s4] sm:$0xff]
      %v754 = vld [vmem:[%s4 + $0x8] sm:$0xff]
      %v755 = vld [vmem:[%s4 + $0x10] sm:$0xff]
      %v756 = vld [vmem:[%s4 + $0x18] sm:$0xff]
      %v757 = vld [vmem:[%s3] sm:$0xff]
      %v758 = vld [vmem:[%s3 + $0x8] sm:$0xff]
      %v759 = vld [vmem:[%s3 + $0x10] sm:$0xff]
      %v760 = vld [vmem:[%s3 + $0x18] sm:$0xff]
      %s761 = scalar_lea.vmem %s3, 32
      %v762 = vld [vmem:[%s761] sm:$0xff]
      %v763 = vld [vmem:[%s761 + $0x8] sm:$0xff]
      %v764 = vld [vmem:[%s761 + $0x10] sm:$0xff]
      %v765 = vld [vmem:[%s761 + $0x18] sm:$0xff]
      %770 = vrot.lane.b32.xlu0 %v749, 127
      %v771 = vpop.permute.xlu0 %770
      %772 = vrot.lane.b32.xlu0 %v750, 127
      %v773 = vpop.permute.xlu0 %772
      %774 = vrot.lane.b32.xlu0 %v751, 127
      %v775 = vpop.permute.xlu0 %774
      %776 = vrot.lane.b32.xlu0 %v752, 127
      %v777 = vpop.permute.xlu0 %776
      %vm782 = vcmask 261120
      %v784 = vsel %vm782, %v762, 0
      %v787 = vsel %vm782, %v763, 0
      %v790 = vsel %vm782, %v764, 0
      %v793 = vsel %vm782, %v765, 0
      %795 = vmatprep.subr.mxu0 0.0
      %796 = vmatpush1.msra.mxu0 0.0
      %797 = vmatprep.subr.mxu0 0.0
      %798 = vmatpush1.msra.mxu0 0.0
      %799 = vmatprep.subr.mxu0 0.0
      %800 = vmatpush1.msra.mxu0 0.0
      %801 = vmatprep.subr.mxu0 0.0
      %802 = vmatpush1.msra.mxu0 0.0
      %803 = vmatprep.subr.mxu0 0.0
      %804 = vmatpush1.msra.mxu0 0.0
      %805 = vmatprep.subr.mxu0 0.0
      %806 = vmatpush1.msra.mxu0 0.0
      %807 = vmatprep.subr.mxu0 0.0
      %808 = vmatpush1.msra.mxu0 0.0
      %809 = vmatprep.subr.mxu0 0.0
      %810 = vmatpush1.msra.mxu0 0.0
      %811 = vmatprep.subr.mxu0 0.0
      %812 = vmatpush1.msra.mxu0 0.0
      %813 = vmatprep.subr.mxu0 0.0
      %814 = vmatpush1.msra.mxu0 0.0
      %815 = vmatprep.subr.mxu0 0.0
      %816 = vmatpush1.msra.mxu0 0.0
      %817 = vmatprep.subr.mxu0 0.0
      %818 = vmatpush1.msra.mxu0 0.0
      %819 = vmatprep.subr.mxu0 0.0
      %820 = vmatpush1.msra.mxu0 %v777
      %821 = vmatprep.subr.mxu0 0.0
      %822 = vmatpush1.msra.mxu0 %v775
      %823 = vmatprep.subr.mxu0 0.0
      %824 = vmatpush1.msra.mxu0 %v773
      %825 = vmatprep.subr.mxu0 0.0
      %826 = vmatpush1.msra.mxu0 %v771
      %827 = vmatprep.subr.mxu0 0.0
      %828 = vmatpush2.msra.mxu0 0.0
      %829 = vmatprep.subr.mxu0 0.0
      %830 = vmatpush2.msra.mxu0 0.0
      %831 = vmatprep.subr.mxu0 0.0
      %832 = vmatpush2.msra.mxu0 0.0
      %833 = vmatprep.subr.mxu0 0.0
      %834 = vmatpush2.msra.mxu0 0.0
      %835 = vmatprep.subr.mxu0 0.0
      %836 = vmatpush2.msra.mxu0 0.0
      %837 = vmatprep.subr.mxu0 0.0
      %838 = vmatpush2.msra.mxu0 0.0
      %839 = vmatprep.subr.mxu0 0.0
      %840 = vmatpush2.msra.mxu0 0.0
      %841 = vmatprep.subr.mxu0 0.0
      %842 = vmatpush2.msra.mxu0 0.0
      %843 = vmatprep.subr.mxu0 0.0
      %844 = vmatpush2.msra.mxu0 0.0
      %845 = vmatprep.subr.mxu0 0.0
      %846 = vmatpush2.msra.mxu0 0.0
      %847 = vmatprep.subr.mxu0 0.0
      %848 = vmatpush2.msra.mxu0 0.0
      %849 = vmatprep.subr.mxu0 0.0
      %850 = vmatpush2.msra.mxu0 0.0
      %851 = vmatprep.subr.mxu0 0.0
      %852 = vmatpush2.msra.mxu0 0.0
      %853 = vmatprep.subr.mxu0 0.0
      %854 = vmatpush2.msra.mxu0 0.0
      %855 = vmatprep.subr.mxu0 0.0
      %856 = vmatpush2.msra.mxu0 0.0
      %857 = vmatprep.subr.mxu0 0.0
      %858 = vmatpush2.msra.mxu0 0.0
      %859 = vmatprep.mubr.f32.mxu0 0.0
      %860 = vmatmul.mubr.f32.gmra.mxu0 %v784
      %v861 = vpop.f32.mrf.mxu0
      %v862 = vadd.f32 0.0, %v861
      %v863 = vpop.f32.mrf.mxu0
      %864 = vmatprep.mubr.f32.mxu0 0.0
      %865 = vmatmul.mubr.f32.gmra.mxu0 %v787
      %v866 = vpop.f32.mrf.mxu0
      %v867 = vadd.f32 0.0, %v866
      %v868 = vpop.f32.mrf.mxu0
      %869 = vmatprep.mubr.f32.mxu0 0.0
      %870 = vmatmul.mubr.f32.gmra.mxu0 %v790
      %v871 = vpop.f32.mrf.mxu0
      %v872 = vadd.f32 0.0, %v871
      %v873 = vpop.f32.mrf.mxu0
      %874 = vmatprep.mubr.f32.mxu0 0.0
      %875 = vmatmul.mubr.f32.gmra.mxu0 %v793
      %v876 = vpop.f32.mrf.mxu0
      %v877 = vadd.f32 0.0, %v876
      %v878 = vpop.f32.mrf.mxu0
      %879 = vdwg.mxu0
      %v881 = vsel %vm782, %v757, 0
      %v884 = vsel %vm782, %v758, 0
      %v887 = vsel %vm782, %v759, 0
      %v890 = vsel %vm782, %v760, 0
      %892 = vmatprep.subr.mxu0 0.0
      %893 = vmatpush1.msra.mxu0 0.0
      %894 = vmatprep.subr.mxu0 0.0
      %895 = vmatpush1.msra.mxu0 0.0
      %896 = vmatprep.subr.mxu0 0.0
      %897 = vmatpush1.msra.mxu0 0.0
      %898 = vmatprep.subr.mxu0 0.0
      %899 = vmatpush1.msra.mxu0 0.0
      %900 = vmatprep.subr.mxu0 0.0
      %901 = vmatpush1.msra.mxu0 0.0
      %902 = vmatprep.subr.mxu0 0.0
      %903 = vmatpush1.msra.mxu0 0.0
      %904 = vmatprep.subr.mxu0 0.0
      %905 = vmatpush1.msra.mxu0 0.0
      %906 = vmatprep.subr.mxu0 0.0
      %907 = vmatpush1.msra.mxu0 0.0
      %908 = vmatprep.subr.mxu0 0.0
      %909 = vmatpush1.msra.mxu0 0.0
      %910 = vmatprep.subr.mxu0 0.0
      %911 = vmatpush1.msra.mxu0 0.0
      %912 = vmatprep.subr.mxu0 0.0
      %913 = vmatpush1.msra.mxu0 0.0
      %914 = vmatprep.subr.mxu0 0.0
      %915 = vmatpush1.msra.mxu0 0.0
      %916 = vmatprep.subr.mxu0 0.0
      %917 = vmatpush1.msra.mxu0 %v752
      %918 = vmatprep.subr.mxu0 0.0
      %919 = vmatpush1.msra.mxu0 %v751
      %920 = vmatprep.subr.mxu0 0.0
      %921 = vmatpush1.msra.mxu0 %v750
      %922 = vmatprep.subr.mxu0 0.0
      %923 = vmatpush1.msra.mxu0 %v749
      %924 = vmatprep.subr.mxu0 0.0
      %925 = vmatpush2.msra.mxu0 0.0
      %926 = vmatprep.subr.mxu0 0.0
      %927 = vmatpush2.msra.mxu0 0.0
      %928 = vmatprep.subr.mxu0 0.0
      %929 = vmatpush2.msra.mxu0 0.0
      %930 = vmatprep.subr.mxu0 0.0
      %931 = vmatpush2.msra.mxu0 0.0
      %932 = vmatprep.subr.mxu0 0.0
      %933 = vmatpush2.msra.mxu0 0.0
      %934 = vmatprep.subr.mxu0 0.0
      %935 = vmatpush2.msra.mxu0 0.0
      %936 = vmatprep.subr.mxu0 0.0
      %937 = vmatpush2.msra.mxu0 0.0
      %938 = vmatprep.subr.mxu0 0.0
      %939 = vmatpush2.msra.mxu0 0.0
      %940 = vmatprep.subr.mxu0 0.0
      %941 = vmatpush2.msra.mxu0 0.0
      %942 = vmatprep.subr.mxu0 0.0
      %943 = vmatpush2.msra.mxu0 0.0
      %944 = vmatprep.subr.mxu0 0.0
      %945 = vmatpush2.msra.mxu0 0.0
      %946 = vmatprep.subr.mxu0 0.0
      %947 = vmatpush2.msra.mxu0 0.0
      %948 = vmatprep.subr.mxu0 0.0
      %949 = vmatpush2.msra.mxu0 0.0
      %950 = vmatprep.subr.mxu0 0.0
      %951 = vmatpush2.msra.mxu0 0.0
      %952 = vmatprep.subr.mxu0 0.0
      %953 = vmatpush2.msra.mxu0 0.0
      %954 = vmatprep.subr.mxu0 0.0
      %955 = vmatpush2.msra.mxu0 0.0
      %956 = vmatprep.mubr.f32.mxu0 0.0
      %957 = vmatmul.mubr.f32.gmra.mxu0 %v881
      %v958 = vpop.f32.mrf.mxu0
      %v959 = vadd.f32 %v862, %v958
      %v960 = vpop.f32.mrf.mxu0
      %961 = vmatprep.mubr.f32.mxu0 0.0
      %962 = vmatmul.mubr.f32.gmra.mxu0 %v884
      %v963 = vpop.f32.mrf.mxu0
      %v964 = vadd.f32 %v867, %v963
      %v965 = vpop.f32.mrf.mxu0
      %966 = vmatprep.mubr.f32.mxu0 0.0
      %967 = vmatmul.mubr.f32.gmra.mxu0 %v887
      %v968 = vpop.f32.mrf.mxu0
      %v969 = vadd.f32 %v872, %v968
      %v970 = vpop.f32.mrf.mxu0
      %971 = vmatprep.mubr.f32.mxu0 0.0
      %972 = vmatmul.mubr.f32.gmra.mxu0 %v890
      %v973 = vpop.f32.mrf.mxu0
      %v974 = vadd.f32 %v877, %v973
      %v975 = vpop.f32.mrf.mxu0
      %976 = vdwg.mxu0
      %s977 = scalar_lea.vmem %s3, 64
      %v978 = vld [vmem:[%s977] sm:$0xff]
      %v979 = vld [vmem:[%s977 + $0x8] sm:$0xff]
      %v980 = vld [vmem:[%s977 + $0x10] sm:$0xff]
      %v981 = vld [vmem:[%s977 + $0x18] sm:$0xff]
      %982 = vrot.lane.b32.xlu0 %v749, 126
      %v983 = vpop.permute.xlu0 %982
      %984 = vrot.lane.b32.xlu0 %v750, 126
      %v985 = vpop.permute.xlu0 %984
      %986 = vrot.lane.b32.xlu0 %v751, 126
      %v987 = vpop.permute.xlu0 %986
      %988 = vrot.lane.b32.xlu0 %v752, 126
      %v989 = vpop.permute.xlu0 %988
      %v995 = vsel %vm782, %v978, 0
      %v998 = vsel %vm782, %v979, 0
      %v1001 = vsel %vm782, %v980, 0
      %v1004 = vsel %vm782, %v981, 0
      %1006 = vmatprep.subr.mxu0 0.0
      %1007 = vmatpush1.msra.mxu0 0.0
      %1008 = vmatprep.subr.mxu0 0.0
      %1009 = vmatpush1.msra.mxu0 0.0
      %1010 = vmatprep.subr.mxu0 0.0
      %1011 = vmatpush1.msra.mxu0 0.0
      %1012 = vmatprep.subr.mxu0 0.0
      %1013 = vmatpush1.msra.mxu0 0.0
      %1014 = vmatprep.subr.mxu0 0.0
      %1015 = vmatpush1.msra.mxu0 0.0
      %1016 = vmatprep.subr.mxu0 0.0
      %1017 = vmatpush1.msra.mxu0 0.0
      %1018 = vmatprep.subr.mxu0 0.0
      %1019 = vmatpush1.msra.mxu0 0.0
      %1020 = vmatprep.subr.mxu0 0.0
      %1021 = vmatpush1.msra.mxu0 0.0
      %1022 = vmatprep.subr.mxu0 0.0
      %1023 = vmatpush1.msra.mxu0 0.0
      %1024 = vmatprep.subr.mxu0 0.0
      %1025 = vmatpush1.msra.mxu0 0.0
      %1026 = vmatprep.subr.mxu0 0.0
      %1027 = vmatpush1.msra.mxu0 0.0
      %1028 = vmatprep.subr.mxu0 0.0
      %1029 = vmatpush1.msra.mxu0 0.0
      %1030 = vmatprep.subr.mxu0 0.0
      %1031 = vmatpush1.msra.mxu0 %v989
      %1032 = vmatprep.subr.mxu0 0.0
      %1033 = vmatpush1.msra.mxu0 %v987
      %1034 = vmatprep.subr.mxu0 0.0
      %1035 = vmatpush1.msra.mxu0 %v985
      %1036 = vmatprep.subr.mxu0 0.0
      %1037 = vmatpush1.msra.mxu0 %v983
      %1038 = vmatprep.subr.mxu0 0.0
      %1039 = vmatpush2.msra.mxu0 0.0
      %1040 = vmatprep.subr.mxu0 0.0
      %1041 = vmatpush2.msra.mxu0 0.0
      %1042 = vmatprep.subr.mxu0 0.0
      %1043 = vmatpush2.msra.mxu0 0.0
      %1044 = vmatprep.subr.mxu0 0.0
      %1045 = vmatpush2.msra.mxu0 0.0
      %1046 = vmatprep.subr.mxu0 0.0
      %1047 = vmatpush2.msra.mxu0 0.0
      %1048 = vmatprep.subr.mxu0 0.0
      %1049 = vmatpush2.msra.mxu0 0.0
      %1050 = vmatprep.subr.mxu0 0.0
      %1051 = vmatpush2.msra.mxu0 0.0
      %1052 = vmatprep.subr.mxu0 0.0
      %1053 = vmatpush2.msra.mxu0 0.0
      %1054 = vmatprep.subr.mxu0 0.0
      %1055 = vmatpush2.msra.mxu0 0.0
      %1056 = vmatprep.subr.mxu0 0.0
      %1057 = vmatpush2.msra.mxu0 0.0
      %1058 = vmatprep.subr.mxu0 0.0
      %1059 = vmatpush2.msra.mxu0 0.0
      %1060 = vmatprep.subr.mxu0 0.0
      %1061 = vmatpush2.msra.mxu0 0.0
      %1062 = vmatprep.subr.mxu0 0.0
      %1063 = vmatpush2.msra.mxu0 0.0
      %1064 = vmatprep.subr.mxu0 0.0
      %1065 = vmatpush2.msra.mxu0 0.0
      %1066 = vmatprep.subr.mxu0 0.0
      %1067 = vmatpush2.msra.mxu0 0.0
      %1068 = vmatprep.subr.mxu0 0.0
      %1069 = vmatpush2.msra.mxu0 0.0
      %1070 = vmatprep.mubr.f32.mxu0 0.0
      %1071 = vmatmul.mubr.f32.gmra.mxu0 %v995
      %v1072 = vpop.f32.mrf.mxu0
      %v1073 = vadd.f32 0.0, %v1072
      %v1074 = vpop.f32.mrf.mxu0
      %1075 = vmatprep.mubr.f32.mxu0 0.0
      %1076 = vmatmul.mubr.f32.gmra.mxu0 %v998
      %v1077 = vpop.f32.mrf.mxu0
      %v1078 = vadd.f32 0.0, %v1077
      %v1079 = vpop.f32.mrf.mxu0
      %1080 = vmatprep.mubr.f32.mxu0 0.0
      %1081 = vmatmul.mubr.f32.gmra.mxu0 %v1001
      %v1082 = vpop.f32.mrf.mxu0
      %v1083 = vadd.f32 0.0, %v1082
      %v1084 = vpop.f32.mrf.mxu0
      %1085 = vmatprep.mubr.f32.mxu0 0.0
      %1086 = vmatmul.mubr.f32.gmra.mxu0 %v1004
      %v1087 = vpop.f32.mrf.mxu0
      %v1088 = vadd.f32 0.0, %v1087
      %v1089 = vpop.f32.mrf.mxu0
      %1090 = vdwg.mxu0
      %v1091 = vadd.f32 %v959, %v1073
      %v1092 = vadd.f32 %v964, %v1078
      %v1093 = vadd.f32 %v969, %v1083
      %v1094 = vadd.f32 %v974, %v1088
      %1096 = vset.pattern.permute.xlu0 0
      %1097 = vperm.xlu0 %1096, %v753
      %v1098 = vpop.permute.xlu0 %1097
      %1101 = vset.pattern.permute.xlu0 0
      %1102 = vperm.xlu0 %1101, %v754
      %v1103 = vpop.permute.xlu0 %1102
      %1106 = vset.pattern.permute.xlu0 0
      %1107 = vperm.xlu0 %1106, %v755
      %v1108 = vpop.permute.xlu0 %1107
      %1111 = vset.pattern.permute.xlu0 0
      %1112 = vperm.xlu0 %1111, %v756
      %v1113 = vpop.permute.xlu0 %1112
      %v1115 = vadd.f32 %v1091, %v1098
      %v1116 = vadd.f32 %v1092, %v1103
      %v1117 = vadd.f32 %v1093, %v1108
      %v1118 = vadd.f32 %v1094, %v1113
      %v1119 = vmul.f32 %v1115, 0.01
      %v1120 = vmul.f32 %v1116, 0.01
      %v1121 = vmul.f32 %v1117, 0.01
      %v1122 = vmul.f32 %v1118, 0.01
      %v1123 = vmax.f32 %v1115, %v1119
      %v1124 = vmax.f32 %v1116, %v1120
      %v1125 = vmax.f32 %v1117, %v1121
      %v1126 = vmax.f32 %v1118, %v1122
      %v1127 = vld [vmem:[%s6] sm:$0xff]
      %v1128 = vld [vmem:[%s6 + $0x8] sm:$0xff]
      %v1129 = vld [vmem:[%s6 + $0x10] sm:$0xff]
      %v1130 = vld [vmem:[%s6 + $0x18] sm:$0xff]
      %v1131 = vld [vmem:[%s5] sm:$0xff]
      %v1132 = vld [vmem:[%s5 + $0x8] sm:$0xff]
      %v1133 = vld [vmem:[%s5 + $0x10] sm:$0xff]
      %v1134 = vld [vmem:[%s5 + $0x18] sm:$0xff]
      %s1135 = scalar_lea.vmem %s5, 32
      %v1136 = vld [vmem:[%s1135] sm:$0xff]
      %v1137 = vld [vmem:[%s1135 + $0x8] sm:$0xff]
      %v1138 = vld [vmem:[%s1135 + $0x10] sm:$0xff]
      %v1139 = vld [vmem:[%s1135 + $0x18] sm:$0xff]
      %1144 = vrot.lane.b32.xlu0 %v1123, 127
      %v1145 = vpop.permute.xlu0 %1144
      %1146 = vrot.lane.b32.xlu0 %v1124, 127
      %v1147 = vpop.permute.xlu0 %1146
      %1148 = vrot.lane.b32.xlu0 %v1125, 127
      %v1149 = vpop.permute.xlu0 %1148
      %1150 = vrot.lane.b32.xlu0 %v1126, 127
      %v1151 = vpop.permute.xlu0 %1150
      %v1157 = vsel %vm782, %v1136, 0
      %v1160 = vsel %vm782, %v1137, 0
      %v1163 = vsel %vm782, %v1138, 0
      %v1166 = vsel %vm782, %v1139, 0
      %1168 = vmatprep.subr.mxu0 0.0
      %1169 = vmatpush1.msra.mxu0 0.0
      %1170 = vmatprep.subr.mxu0 0.0
      %1171 = vmatpush1.msra.mxu0 0.0
      %1172 = vmatprep.subr.mxu0 0.0
      %1173 = vmatpush1.msra.mxu0 0.0
      %1174 = vmatprep.subr.mxu0 0.0
      %1175 = vmatpush1.msra.mxu0 0.0
      %1176 = vmatprep.subr.mxu0 0.0
      %1177 = vmatpush1.msra.mxu0 0.0
      %1178 = vmatprep.subr.mxu0 0.0
      %1179 = vmatpush1.msra.mxu0 0.0
      %1180 = vmatprep.subr.mxu0 0.0
      %1181 = vmatpush1.msra.mxu0 0.0
      %1182 = vmatprep.subr.mxu0 0.0
      %1183 = vmatpush1.msra.mxu0 0.0
      %1184 = vmatprep.subr.mxu0 0.0
      %1185 = vmatpush1.msra.mxu0 0.0
      %1186 = vmatprep.subr.mxu0 0.0
      %1187 = vmatpush1.msra.mxu0 0.0
      %1188 = vmatprep.subr.mxu0 0.0
      %1189 = vmatpush1.msra.mxu0 0.0
      %1190 = vmatprep.subr.mxu0 0.0
      %1191 = vmatpush1.msra.mxu0 0.0
      %1192 = vmatprep.subr.mxu0 0.0
      %1193 = vmatpush1.msra.mxu0 %v1151
      %1194 = vmatprep.subr.mxu0 0.0
      %1195 = vmatpush1.msra.mxu0 %v1149
      %1196 = vmatprep.subr.mxu0 0.0
      %1197 = vmatpush1.msra.mxu0 %v1147
      %1198 = vmatprep.subr.mxu0 0.0
      %1199 = vmatpush1.msra.mxu0 %v1145
      %1200 = vmatprep.subr.mxu0 0.0
      %1201 = vmatpush2.msra.mxu0 0.0
      %1202 = vmatprep.subr.mxu0 0.0
      %1203 = vmatpush2.msra.mxu0 0.0
      %1204 = vmatprep.subr.mxu0 0.0
      %1205 = vmatpush2.msra.mxu0 0.0
      %1206 = vmatprep.subr.mxu0 0.0
      %1207 = vmatpush2.msra.mxu0 0.0
      %1208 = vmatprep.subr.mxu0 0.0
      %1209 = vmatpush2.msra.mxu0 0.0
      %1210 = vmatprep.subr.mxu0 0.0
      %1211 = vmatpush2.msra.mxu0 0.0
      %1212 = vmatprep.subr.mxu0 0.0
      %1213 = vmatpush2.msra.mxu0 0.0
      %1214 = vmatprep.subr.mxu0 0.0
      %1215 = vmatpush2.msra.mxu0 0.0
      %1216 = vmatprep.subr.mxu0 0.0
      %1217 = vmatpush2.msra.mxu0 0.0
      %1218 = vmatprep.subr.mxu0 0.0
      %1219 = vmatpush2.msra.mxu0 0.0
      %1220 = vmatprep.subr.mxu0 0.0
      %1221 = vmatpush2.msra.mxu0 0.0
      %1222 = vmatprep.subr.mxu0 0.0
      %1223 = vmatpush2.msra.mxu0 0.0
      %1224 = vmatprep.subr.mxu0 0.0
      %1225 = vmatpush2.msra.mxu0 0.0
      %1226 = vmatprep.subr.mxu0 0.0
      %1227 = vmatpush2.msra.mxu0 0.0
      %1228 = vmatprep.subr.mxu0 0.0
      %1229 = vmatpush2.msra.mxu0 0.0
      %1230 = vmatprep.subr.mxu0 0.0
      %1231 = vmatpush2.msra.mxu0 0.0
      %1232 = vmatprep.mubr.f32.mxu0 0.0
      %1233 = vmatmul.mubr.f32.gmra.mxu0 %v1157
      %v1234 = vpop.f32.mrf.mxu0
      %v1235 = vadd.f32 0.0, %v1234
      %v1236 = vpop.f32.mrf.mxu0
      %1237 = vmatprep.mubr.f32.mxu0 0.0
      %1238 = vmatmul.mubr.f32.gmra.mxu0 %v1160
      %v1239 = vpop.f32.mrf.mxu0
      %v1240 = vadd.f32 0.0, %v1239
      %v1241 = vpop.f32.mrf.mxu0
      %1242 = vmatprep.mubr.f32.mxu0 0.0
      %1243 = vmatmul.mubr.f32.gmra.mxu0 %v1163
      %v1244 = vpop.f32.mrf.mxu0
      %v1245 = vadd.f32 0.0, %v1244
      %v1246 = vpop.f32.mrf.mxu0
      %1247 = vmatprep.mubr.f32.mxu0 0.0
      %1248 = vmatmul.mubr.f32.gmra.mxu0 %v1166
      %v1249 = vpop.f32.mrf.mxu0
      %v1250 = vadd.f32 0.0, %v1249
      %v1251 = vpop.f32.mrf.mxu0
      %1252 = vdwg.mxu0
      %v1254 = vsel %vm782, %v1131, 0
      %v1257 = vsel %vm782, %v1132, 0
      %v1260 = vsel %vm782, %v1133, 0
      %v1263 = vsel %vm782, %v1134, 0
      %1265 = vmatprep.subr.mxu0 0.0
      %1266 = vmatpush1.msra.mxu0 0.0
      %1267 = vmatprep.subr.mxu0 0.0
      %1268 = vmatpush1.msra.mxu0 0.0
      %1269 = vmatprep.subr.mxu0 0.0
      %1270 = vmatpush1.msra.mxu0 0.0
      %1271 = vmatprep.subr.mxu0 0.0
      %1272 = vmatpush1.msra.mxu0 0.0
      %1273 = vmatprep.subr.mxu0 0.0
      %1274 = vmatpush1.msra.mxu0 0.0
      %1275 = vmatprep.subr.mxu0 0.0
      %1276 = vmatpush1.msra.mxu0 0.0
      %1277 = vmatprep.subr.mxu0 0.0
      %1278 = vmatpush1.msra.mxu0 0.0
      %1279 = vmatprep.subr.mxu0 0.0
      %1280 = vmatpush1.msra.mxu0 0.0
      %1281 = vmatprep.subr.mxu0 0.0
      %1282 = vmatpush1.msra.mxu0 0.0
      %1283 = vmatprep.subr.mxu0 0.0
      %1284 = vmatpush1.msra.mxu0 0.0
      %1285 = vmatprep.subr.mxu0 0.0
      %1286 = vmatpush1.msra.mxu0 0.0
      %1287 = vmatprep.subr.mxu0 0.0
      %1288 = vmatpush1.msra.mxu0 0.0
      %1289 = vmatprep.subr.mxu0 0.0
      %1290 = vmatpush1.msra.mxu0 %v1126
      %1291 = vmatprep.subr.mxu0 0.0
      %1292 = vmatpush1.msra.mxu0 %v1125
      %1293 = vmatprep.subr.mxu0 0.0
      %1294 = vmatpush1.msra.mxu0 %v1124
      %1295 = vmatprep.subr.mxu0 0.0
      %1296 = vmatpush1.msra.mxu0 %v1123
      %1297 = vmatprep.subr.mxu0 0.0
      %1298 = vmatpush2.msra.mxu0 0.0
      %1299 = vmatprep.subr.mxu0 0.0
      %1300 = vmatpush2.msra.mxu0 0.0
      %1301 = vmatprep.subr.mxu0 0.0
      %1302 = vmatpush2.msra.mxu0 0.0
      %1303 = vmatprep.subr.mxu0 0.0
      %1304 = vmatpush2.msra.mxu0 0.0
      %1305 = vmatprep.subr.mxu0 0.0
      %1306 = vmatpush2.msra.mxu0 0.0
      %1307 = vmatprep.subr.mxu0 0.0
      %1308 = vmatpush2.msra.mxu0 0.0
      %1309 = vmatprep.subr.mxu0 0.0
      %1310 = vmatpush2.msra.mxu0 0.0
      %1311 = vmatprep.subr.mxu0 0.0
      %1312 = vmatpush2.msra.mxu0 0.0
      %1313 = vmatprep.subr.mxu0 0.0
      %1314 = vmatpush2.msra.mxu0 0.0
      %1315 = vmatprep.subr.mxu0 0.0
      %1316 = vmatpush2.msra.mxu0 0.0
      %1317 = vmatprep.subr.mxu0 0.0
      %1318 = vmatpush2.msra.mxu0 0.0
      %1319 = vmatprep.subr.mxu0 0.0
      %1320 = vmatpush2.msra.mxu0 0.0
      %1321 = vmatprep.subr.mxu0 0.0
      %1322 = vmatpush2.msra.mxu0 0.0
      %1323 = vmatprep.subr.mxu0 0.0
      %1324 = vmatpush2.msra.mxu0 0.0
      %1325 = vmatprep.subr.mxu0 0.0
      %1326 = vmatpush2.msra.mxu0 0.0
      %1327 = vmatprep.subr.mxu0 0.0
      %1328 = vmatpush2.msra.mxu0 0.0
      %1329 = vmatprep.mubr.f32.mxu0 0.0
      %1330 = vmatmul.mubr.f32.gmra.mxu0 %v1254
      %v1331 = vpop.f32.mrf.mxu0
      %v1332 = vadd.f32 %v1235, %v1331
      %v1333 = vpop.f32.mrf.mxu0
      %1334 = vmatprep.mubr.f32.mxu0 0.0
      %1335 = vmatmul.mubr.f32.gmra.mxu0 %v1257
      %v1336 = vpop.f32.mrf.mxu0
      %v1337 = vadd.f32 %v1240, %v1336
      %v1338 = vpop.f32.mrf.mxu0
      %1339 = vmatprep.mubr.f32.mxu0 0.0
      %1340 = vmatmul.mubr.f32.gmra.mxu0 %v1260
      %v1341 = vpop.f32.mrf.mxu0
      %v1342 = vadd.f32 %v1245, %v1341
      %v1343 = vpop.f32.mrf.mxu0
      %1344 = vmatprep.mubr.f32.mxu0 0.0
      %1345 = vmatmul.mubr.f32.gmra.mxu0 %v1263
      %v1346 = vpop.f32.mrf.mxu0
      %v1347 = vadd.f32 %v1250, %v1346
      %v1348 = vpop.f32.mrf.mxu0
      %1349 = vdwg.mxu0
      %s1350 = scalar_lea.vmem %s5, 64
      %v1351 = vld [vmem:[%s1350] sm:$0xff]
      %v1352 = vld [vmem:[%s1350 + $0x8] sm:$0xff]
      %v1353 = vld [vmem:[%s1350 + $0x10] sm:$0xff]
      %v1354 = vld [vmem:[%s1350 + $0x18] sm:$0xff]
      %1355 = vrot.lane.b32.xlu0 %v1123, 126
      %v1356 = vpop.permute.xlu0 %1355
      %1357 = vrot.lane.b32.xlu0 %v1124, 126
      %v1358 = vpop.permute.xlu0 %1357
      %1359 = vrot.lane.b32.xlu0 %v1125, 126
      %v1360 = vpop.permute.xlu0 %1359
      %1361 = vrot.lane.b32.xlu0 %v1126, 126
      %v1362 = vpop.permute.xlu0 %1361
      %v1368 = vsel %vm782, %v1351, 0
      %v1371 = vsel %vm782, %v1352, 0
      %v1374 = vsel %vm782, %v1353, 0
      %v1377 = vsel %vm782, %v1354, 0
      %1379 = vmatprep.subr.mxu0 0.0
      %1380 = vmatpush1.msra.mxu0 0.0
      %1381 = vmatprep.subr.mxu0 0.0
      %1382 = vmatpush1.msra.mxu0 0.0
      %1383 = vmatprep.subr.mxu0 0.0
      %1384 = vmatpush1.msra.mxu0 0.0
      %1385 = vmatprep.subr.mxu0 0.0
      %1386 = vmatpush1.msra.mxu0 0.0
      %1387 = vmatprep.subr.mxu0 0.0
      %1388 = vmatpush1.msra.mxu0 0.0
      %1389 = vmatprep.subr.mxu0 0.0
      %1390 = vmatpush1.msra.mxu0 0.0
      %1391 = vmatprep.subr.mxu0 0.0
      %1392 = vmatpush1.msra.mxu0 0.0
      %1393 = vmatprep.subr.mxu0 0.0
      %1394 = vmatpush1.msra.mxu0 0.0
      %1395 = vmatprep.subr.mxu0 0.0
      %1396 = vmatpush1.msra.mxu0 0.0
      %1397 = vmatprep.subr.mxu0 0.0
      %1398 = vmatpush1.msra.mxu0 0.0
      %1399 = vmatprep.subr.mxu0 0.0
      %1400 = vmatpush1.msra.mxu0 0.0
      %1401 = vmatprep.subr.mxu0 0.0
      %1402 = vmatpush1.msra.mxu0 0.0
      %1403 = vmatprep.subr.mxu0 0.0
      %1404 = vmatpush1.msra.mxu0 %v1362
      %1405 = vmatprep.subr.mxu0 0.0
      %1406 = vmatpush1.msra.mxu0 %v1360
      %1407 = vmatprep.subr.mxu0 0.0
      %1408 = vmatpush1.msra.mxu0 %v1358
      %1409 = vmatprep.subr.mxu0 0.0
      %1410 = vmatpush1.msra.mxu0 %v1356
      %1411 = vmatprep.subr.mxu0 0.0
      %1412 = vmatpush2.msra.mxu0 0.0
      %1413 = vmatprep.subr.mxu0 0.0
      %1414 = vmatpush2.msra.mxu0 0.0
      %1415 = vmatprep.subr.mxu0 0.0
      %1416 = vmatpush2.msra.mxu0 0.0
      %1417 = vmatprep.subr.mxu0 0.0
      %1418 = vmatpush2.msra.mxu0 0.0
      %1419 = vmatprep.subr.mxu0 0.0
      %1420 = vmatpush2.msra.mxu0 0.0
      %1421 = vmatprep.subr.mxu0 0.0
      %1422 = vmatpush2.msra.mxu0 0.0
      %1423 = vmatprep.subr.mxu0 0.0
      %1424 = vmatpush2.msra.mxu0 0.0
      %1425 = vmatprep.subr.mxu0 0.0
      %1426 = vmatpush2.msra.mxu0 0.0
      %1427 = vmatprep.subr.mxu0 0.0
      %1428 = vmatpush2.msra.mxu0 0.0
      %1429 = vmatprep.subr.mxu0 0.0
      %1430 = vmatpush2.msra.mxu0 0.0
      %1431 = vmatprep.subr.mxu0 0.0
      %1432 = vmatpush2.msra.mxu0 0.0
      %1433 = vmatprep.subr.mxu0 0.0
      %1434 = vmatpush2.msra.mxu0 0.0
      %1435 = vmatprep.subr.mxu0 0.0
      %1436 = vmatpush2.msra.mxu0 0.0
      %1437 = vmatprep.subr.mxu0 0.0
      %1438 = vmatpush2.msra.mxu0 0.0
      %1439 = vmatprep.subr.mxu0 0.0
      %1440 = vmatpush2.msra.mxu0 0.0
      %1441 = vmatprep.subr.mxu0 0.0
      %1442 = vmatpush2.msra.mxu0 0.0
      %1443 = vmatprep.mubr.f32.mxu0 0.0
      %1444 = vmatmul.mubr.f32.gmra.mxu0 %v1368
      %v1445 = vpop.f32.mrf.mxu0
      %v1446 = vadd.f32 0.0, %v1445
      %v1447 = vpop.f32.mrf.mxu0
      %1448 = vmatprep.mubr.f32.mxu0 0.0
      %1449 = vmatmul.mubr.f32.gmra.mxu0 %v1371
      %v1450 = vpop.f32.mrf.mxu0
      %v1451 = vadd.f32 0.0, %v1450
      %v1452 = vpop.f32.mrf.mxu0
      %1453 = vmatprep.mubr.f32.mxu0 0.0
      %1454 = vmatmul.mubr.f32.gmra.mxu0 %v1374
      %v1455 = vpop.f32.mrf.mxu0
      %v1456 = vadd.f32 0.0, %v1455
      %v1457 = vpop.f32.mrf.mxu0
      %1458 = vmatprep.mubr.f32.mxu0 0.0
      %1459 = vmatmul.mubr.f32.gmra.mxu0 %v1377
      %v1460 = vpop.f32.mrf.mxu0
      %v1461 = vadd.f32 0.0, %v1460
      %v1462 = vpop.f32.mrf.mxu0
      %1463 = vdwg.mxu0
      %v1464 = vadd.f32 %v1332, %v1446
      %v1465 = vadd.f32 %v1337, %v1451
      %v1466 = vadd.f32 %v1342, %v1456
      %v1467 = vadd.f32 %v1347, %v1461
      %1469 = vset.pattern.permute.xlu0 0
      %1470 = vperm.xlu0 %1469, %v1127
      %v1471 = vpop.permute.xlu0 %1470
      %1474 = vset.pattern.permute.xlu0 0
      %1475 = vperm.xlu0 %1474, %v1128
      %v1476 = vpop.permute.xlu0 %1475
      %1479 = vset.pattern.permute.xlu0 0
      %1480 = vperm.xlu0 %1479, %v1129
      %v1481 = vpop.permute.xlu0 %1480
      %1484 = vset.pattern.permute.xlu0 0
      %1485 = vperm.xlu0 %1484, %v1130
      %v1486 = vpop.permute.xlu0 %1485
      %v1488 = vadd.f32 %v1464, %v1471
      %v1489 = vadd.f32 %v1465, %v1476
      %v1490 = vadd.f32 %v1466, %v1481
      %v1491 = vadd.f32 %v1467, %v1486
      %v1492 = vmul.f32 %v1488, 0.01
      %v1493 = vmul.f32 %v1489, 0.01
      %v1494 = vmul.f32 %v1490, 0.01
      %v1495 = vmul.f32 %v1491, 0.01
      %v1496 = vmax.f32 %v1488, %v1492
      %v1497 = vmax.f32 %v1489, %v1493
      %v1498 = vmax.f32 %v1490, %v1494
      %v1499 = vmax.f32 %v1491, %v1495
      %1504 = vrot.lane.b32.xlu0 %v1496, 127
      %v1505 = vpop.permute.xlu0 %1504
      %1506 = vrot.lane.b32.xlu0 %v1497, 127
      %v1507 = vpop.permute.xlu0 %1506
      %1508 = vrot.lane.b32.xlu0 %v1498, 127
      %v1509 = vpop.permute.xlu0 %1508
      %1510 = vrot.lane.b32.xlu0 %v1499, 127
      %v1511 = vpop.permute.xlu0 %1510
      %v1516 = vmax.f32 %v1496, %v1505
      %v1517 = vmax.f32 %v1497, %v1507
      %v1518 = vmax.f32 %v1498, %v1509
      %v1519 = vmax.f32 %v1499, %v1511
      %v1520 = vld [vmem:[%s8] sm:$0xff]
      %v1521 = vld [vmem:[%s8 + $0x8] sm:$0xff]
      %v1522 = vld [vmem:[%s8 + $0x10] sm:$0xff]
      %v1523 = vld [vmem:[%s8 + $0x18] sm:$0xff]
      %v1524 = vld [vmem:[%s8 + $0x20] sm:$0xff]
      %v1525 = vld [vmem:[%s8 + $0x28] sm:$0xff]
      %v1526 = vld [vmem:[%s8 + $0x30] sm:$0xff]
      %v1527 = vld [vmem:[%s8 + $0x38] sm:$0xff]
      %v1528 = vld [vmem:[%s8 + $0x40] sm:$0xff]
      %v1529 = vld [vmem:[%s8 + $0x48] sm:$0xff]
      %v1530 = vld [vmem:[%s8 + $0x50] sm:$0xff]
      %v1531 = vld [vmem:[%s8 + $0x58] sm:$0xff]
      %v1532 = vld [vmem:[%s8 + $0x60] sm:$0xff]
      %v1533 = vld [vmem:[%s8 + $0x68] sm:$0xff]
      %v1534 = vld [vmem:[%s8 + $0x70] sm:$0xff]
      %v1535 = vld [vmem:[%s8 + $0x78] sm:$0x7]
      %vm1536 = vcmask 1006592
      %v1538 = vsel %vm1536, %v1516, 0
      %v1541 = vsel %vm1536, %v1517, 0
      %v1544 = vsel %vm1536, %v1518, 0
      %v1547 = vsel %vm1536, %v1519, 0
      %vm1549 = vcmask 1042432
      %v1551 = vsel %vm1549, %v1535, 0
      %1553 = vmatprep.subr.mxu0 0.0
      %1554 = vmatpush1.msra.mxu0 %v1551
      %1555 = vmatprep.subr.mxu0 0.0
      %1556 = vmatpush1.msra.mxu0 %v1534
      %1557 = vmatprep.subr.mxu0 0.0
      %1558 = vmatpush1.msra.mxu0 %v1533
      %1559 = vmatprep.subr.mxu0 0.0
      %1560 = vmatpush1.msra.mxu0 %v1532
      %1561 = vmatprep.subr.mxu0 0.0
      %1562 = vmatpush1.msra.mxu0 %v1531
      %1563 = vmatprep.subr.mxu0 0.0
      %1564 = vmatpush1.msra.mxu0 %v1530
      %1565 = vmatprep.subr.mxu0 0.0
      %1566 = vmatpush1.msra.mxu0 %v1529
      %1567 = vmatprep.subr.mxu0 0.0
      %1568 = vmatpush1.msra.mxu0 %v1528
      %1569 = vmatprep.subr.mxu0 0.0
      %1570 = vmatpush1.msra.mxu0 %v1527
      %1571 = vmatprep.subr.mxu0 0.0
      %1572 = vmatpush1.msra.mxu0 %v1526
      %1573 = vmatprep.subr.mxu0 0.0
      %1574 = vmatpush1.msra.mxu0 %v1525
      %1575 = vmatprep.subr.mxu0 0.0
      %1576 = vmatpush1.msra.mxu0 %v1524
      %1577 = vmatprep.subr.mxu0 0.0
      %1578 = vmatpush1.msra.mxu0 %v1523
      %1579 = vmatprep.subr.mxu0 0.0
      %1580 = vmatpush1.msra.mxu0 %v1522
      %1581 = vmatprep.subr.mxu0 0.0
      %1582 = vmatpush1.msra.mxu0 %v1521
      %1583 = vmatprep.subr.mxu0 0.0
      %1584 = vmatpush1.msra.mxu0 %v1520
      %1585 = vmatprep.subr.mxu0 0.0
      %1586 = vmatpush2.msra.mxu0 0.0
      %1587 = vmatprep.subr.mxu0 0.0
      %1588 = vmatpush2.msra.mxu0 0.0
      %1589 = vmatprep.subr.mxu0 0.0
      %1590 = vmatpush2.msra.mxu0 0.0
      %1591 = vmatprep.subr.mxu0 0.0
      %1592 = vmatpush2.msra.mxu0 0.0
      %1593 = vmatprep.subr.mxu0 0.0
      %1594 = vmatpush2.msra.mxu0 0.0
      %1595 = vmatprep.subr.mxu0 0.0
      %1596 = vmatpush2.msra.mxu0 0.0
      %1597 = vmatprep.subr.mxu0 0.0
      %1598 = vmatpush2.msra.mxu0 0.0
      %1599 = vmatprep.subr.mxu0 0.0
      %1600 = vmatpush2.msra.mxu0 0.0
      %1601 = vmatprep.subr.mxu0 0.0
      %1602 = vmatpush2.msra.mxu0 0.0
      %1603 = vmatprep.subr.mxu0 0.0
      %1604 = vmatpush2.msra.mxu0 0.0
      %1605 = vmatprep.subr.mxu0 0.0
      %1606 = vmatpush2.msra.mxu0 0.0
      %1607 = vmatprep.subr.mxu0 0.0
      %1608 = vmatpush2.msra.mxu0 0.0
      %1609 = vmatprep.subr.mxu0 0.0
      %1610 = vmatpush2.msra.mxu0 0.0
      %1611 = vmatprep.subr.mxu0 0.0
      %1612 = vmatpush2.msra.mxu0 0.0
      %1613 = vmatprep.subr.mxu0 0.0
      %1614 = vmatpush2.msra.mxu0 0.0
      %1615 = vmatprep.subr.mxu0 0.0
      %1616 = vmatpush2.msra.mxu0 0.0
      %1617 = vmatprep.mubr.f32.mxu0 0.0
      %1618 = vmatmul.mubr.f32.gmra.mxu0 %v1538
      %v1619 = vpop.f32.mrf.mxu0
      %v1620 = vadd.f32 0.0, %v1619
      %v1621 = vpop.f32.mrf.mxu0
      %1622 = vmatprep.mubr.f32.mxu0 0.0
      %1623 = vmatmul.mubr.f32.gmra.mxu0 %v1541
      %v1624 = vpop.f32.mrf.mxu0
      %v1625 = vadd.f32 0.0, %v1624
      %v1626 = vpop.f32.mrf.mxu0
      %1627 = vmatprep.mubr.f32.mxu0 0.0
      %1628 = vmatmul.mubr.f32.gmra.mxu0 %v1544
      %v1629 = vpop.f32.mrf.mxu0
      %v1630 = vadd.f32 0.0, %v1629
      %v1631 = vpop.f32.mrf.mxu0
      %1632 = vmatprep.mubr.f32.mxu0 0.0
      %1633 = vmatmul.mubr.f32.gmra.mxu0 %v1547
      %v1634 = vpop.f32.mrf.mxu0
      %v1635 = vadd.f32 0.0, %v1634
      %v1636 = vpop.f32.mrf.mxu0
      %1637 = vdwg.mxu0
      %s1638 = scalar_lea.vmem %s6, 32
      %v1639 = vld [vmem:[%s1638] sm:$0xff]
      %v1640 = vld [vmem:[%s1638 + $0x8] sm:$0xff]
      %v1641 = vld [vmem:[%s1638 + $0x10] sm:$0xff]
      %v1642 = vld [vmem:[%s1638 + $0x18] sm:$0xff]
      %s1643 = scalar_lea.vmem %s5, 96
      %v1644 = vld [vmem:[%s1643] sm:$0xff]
      %v1645 = vld [vmem:[%s1643 + $0x8] sm:$0xff]
      %v1646 = vld [vmem:[%s1643 + $0x10] sm:$0xff]
      %v1647 = vld [vmem:[%s1643 + $0x18] sm:$0xff]
      %s1648 = scalar_lea.vmem %s5, 128
      %v1649 = vld [vmem:[%s1648] sm:$0xff]
      %v1650 = vld [vmem:[%s1648 + $0x8] sm:$0xff]
      %v1651 = vld [vmem:[%s1648 + $0x10] sm:$0xff]
      %v1652 = vld [vmem:[%s1648 + $0x18] sm:$0xff]
      %1657 = vrot.lane.b32.xlu0 %v1620, 127
      %v1658 = vpop.permute.xlu0 %1657
      %1659 = vrot.lane.b32.xlu0 %v1625, 127
      %v1660 = vpop.permute.xlu0 %1659
      %1661 = vrot.lane.b32.xlu0 %v1630, 127
      %v1662 = vpop.permute.xlu0 %1661
      %1663 = vrot.lane.b32.xlu0 %v1635, 127
      %v1664 = vpop.permute.xlu0 %1663
      %v1670 = vsel %vm782, %v1649, 0
      %v1673 = vsel %vm782, %v1650, 0
      %v1676 = vsel %vm782, %v1651, 0
      %v1679 = vsel %vm782, %v1652, 0
      %1681 = vmatprep.subr.mxu0 0.0
      %1682 = vmatpush1.msra.mxu0 0.0
      %1683 = vmatprep.subr.mxu0 0.0
      %1684 = vmatpush1.msra.mxu0 0.0
      %1685 = vmatprep.subr.mxu0 0.0
      %1686 = vmatpush1.msra.mxu0 0.0
      %1687 = vmatprep.subr.mxu0 0.0
      %1688 = vmatpush1.msra.mxu0 0.0
      %1689 = vmatprep.subr.mxu0 0.0
      %1690 = vmatpush1.msra.mxu0 0.0
      %1691 = vmatprep.subr.mxu0 0.0
      %1692 = vmatpush1.msra.mxu0 0.0
      %1693 = vmatprep.subr.mxu0 0.0
      %1694 = vmatpush1.msra.mxu0 0.0
      %1695 = vmatprep.subr.mxu0 0.0
      %1696 = vmatpush1.msra.mxu0 0.0
      %1697 = vmatprep.subr.mxu0 0.0
      %1698 = vmatpush1.msra.mxu0 0.0
      %1699 = vmatprep.subr.mxu0 0.0
      %1700 = vmatpush1.msra.mxu0 0.0
      %1701 = vmatprep.subr.mxu0 0.0
      %1702 = vmatpush1.msra.mxu0 0.0
      %1703 = vmatprep.subr.mxu0 0.0
      %1704 = vmatpush1.msra.mxu0 0.0
      %1705 = vmatprep.subr.mxu0 0.0
      %1706 = vmatpush1.msra.mxu0 %v1664
      %1707 = vmatprep.subr.mxu0 0.0
      %1708 = vmatpush1.msra.mxu0 %v1662
      %1709 = vmatprep.subr.mxu0 0.0
      %1710 = vmatpush1.msra.mxu0 %v1660
      %1711 = vmatprep.subr.mxu0 0.0
      %1712 = vmatpush1.msra.mxu0 %v1658
      %1713 = vmatprep.subr.mxu0 0.0
      %1714 = vmatpush2.msra.mxu0 0.0
      %1715 = vmatprep.subr.mxu0 0.0
      %1716 = vmatpush2.msra.mxu0 0.0
      %1717 = vmatprep.subr.mxu0 0.0
      %1718 = vmatpush2.msra.mxu0 0.0
      %1719 = vmatprep.subr.mxu0 0.0
      %1720 = vmatpush2.msra.mxu0 0.0
      %1721 = vmatprep.subr.mxu0 0.0
      %1722 = vmatpush2.msra.mxu0 0.0
      %1723 = vmatprep.subr.mxu0 0.0
      %1724 = vmatpush2.msra.mxu0 0.0
      %1725 = vmatprep.subr.mxu0 0.0
      %1726 = vmatpush2.msra.mxu0 0.0
      %1727 = vmatprep.subr.mxu0 0.0
      %1728 = vmatpush2.msra.mxu0 0.0
      %1729 = vmatprep.subr.mxu0 0.0
      %1730 = vmatpush2.msra.mxu0 0.0
      %1731 = vmatprep.subr.mxu0 0.0
      %1732 = vmatpush2.msra.mxu0 0.0
      %1733 = vmatprep.subr.mxu0 0.0
      %1734 = vmatpush2.msra.mxu0 0.0
      %1735 = vmatprep.subr.mxu0 0.0
      %1736 = vmatpush2.msra.mxu0 0.0
      %1737 = vmatprep.subr.mxu0 0.0
      %1738 = vmatpush2.msra.mxu0 0.0
      %1739 = vmatprep.subr.mxu0 0.0
      %1740 = vmatpush2.msra.mxu0 0.0
      %1741 = vmatprep.subr.mxu0 0.0
      %1742 = vmatpush2.msra.mxu0 0.0
      %1743 = vmatprep.subr.mxu0 0.0
      %1744 = vmatpush2.msra.mxu0 0.0
      %1745 = vmatprep.mubr.f32.mxu0 0.0
      %1746 = vmatmul.mubr.f32.gmra.mxu0 %v1670
      %v1747 = vpop.f32.mrf.mxu0
      %v1748 = vadd.f32 0.0, %v1747
      %v1749 = vpop.f32.mrf.mxu0
      %1750 = vmatprep.mubr.f32.mxu0 0.0
      %1751 = vmatmul.mubr.f32.gmra.mxu0 %v1673
      %v1752 = vpop.f32.mrf.mxu0
      %v1753 = vadd.f32 0.0, %v1752
      %v1754 = vpop.f32.mrf.mxu0
      %1755 = vmatprep.mubr.f32.mxu0 0.0
      %1756 = vmatmul.mubr.f32.gmra.mxu0 %v1676
      %v1757 = vpop.f32.mrf.mxu0
      %v1758 = vadd.f32 0.0, %v1757
      %v1759 = vpop.f32.mrf.mxu0
      %1760 = vmatprep.mubr.f32.mxu0 0.0
      %1761 = vmatmul.mubr.f32.gmra.mxu0 %v1679
      %v1762 = vpop.f32.mrf.mxu0
      %v1763 = vadd.f32 0.0, %v1762
      %v1764 = vpop.f32.mrf.mxu0
      %1765 = vdwg.mxu0
      %v1767 = vsel %vm782, %v1644, 0
      %v1770 = vsel %vm782, %v1645, 0
      %v1773 = vsel %vm782, %v1646, 0
      %v1776 = vsel %vm782, %v1647, 0
      %1778 = vmatprep.subr.mxu0 0.0
      %1779 = vmatpush1.msra.mxu0 0.0
      %1780 = vmatprep.subr.mxu0 0.0
      %1781 = vmatpush1.msra.mxu0 0.0
      %1782 = vmatprep.subr.mxu0 0.0
      %1783 = vmatpush1.msra.mxu0 0.0
      %1784 = vmatprep.subr.mxu0 0.0
      %1785 = vmatpush1.msra.mxu0 0.0
      %1786 = vmatprep.subr.mxu0 0.0
      %1787 = vmatpush1.msra.mxu0 0.0
      %1788 = vmatprep.subr.mxu0 0.0
      %1789 = vmatpush1.msra.mxu0 0.0
      %1790 = vmatprep.subr.mxu0 0.0
      %1791 = vmatpush1.msra.mxu0 0.0
      %1792 = vmatprep.subr.mxu0 0.0
      %1793 = vmatpush1.msra.mxu0 0.0
      %1794 = vmatprep.subr.mxu0 0.0
      %1795 = vmatpush1.msra.mxu0 0.0
      %1796 = vmatprep.subr.mxu0 0.0
      %1797 = vmatpush1.msra.mxu0 0.0
      %1798 = vmatprep.subr.mxu0 0.0
      %1799 = vmatpush1.msra.mxu0 0.0
      %1800 = vmatprep.subr.mxu0 0.0
      %1801 = vmatpush1.msra.mxu0 0.0
      %1802 = vmatprep.subr.mxu0 0.0
      %1803 = vmatpush1.msra.mxu0 %v1635
      %1804 = vmatprep.subr.mxu0 0.0
      %1805 = vmatpush1.msra.mxu0 %v1630
      %1806 = vmatprep.subr.mxu0 0.0
      %1807 = vmatpush1.msra.mxu0 %v1625
      %1808 = vmatprep.subr.mxu0 0.0
      %1809 = vmatpush1.msra.mxu0 %v1620
      %1810 = vmatprep.subr.mxu0 0.0
      %1811 = vmatpush2.msra.mxu0 0.0
      %1812 = vmatprep.subr.mxu0 0.0
      %1813 = vmatpush2.msra.mxu0 0.0
      %1814 = vmatprep.subr.mxu0 0.0
      %1815 = vmatpush2.msra.mxu0 0.0
      %1816 = vmatprep.subr.mxu0 0.0
      %1817 = vmatpush2.msra.mxu0 0.0
      %1818 = vmatprep.subr.mxu0 0.0
      %1819 = vmatpush2.msra.mxu0 0.0
      %1820 = vmatprep.subr.mxu0 0.0
      %1821 = vmatpush2.msra.mxu0 0.0
      %1822 = vmatprep.subr.mxu0 0.0
      %1823 = vmatpush2.msra.mxu0 0.0
      %1824 = vmatprep.subr.mxu0 0.0
      %1825 = vmatpush2.msra.mxu0 0.0
      %1826 = vmatprep.subr.mxu0 0.0
      %1827 = vmatpush2.msra.mxu0 0.0
      %1828 = vmatprep.subr.mxu0 0.0
      %1829 = vmatpush2.msra.mxu0 0.0
      %1830 = vmatprep.subr.mxu0 0.0
      %1831 = vmatpush2.msra.mxu0 0.0
      %1832 = vmatprep.subr.mxu0 0.0
      %1833 = vmatpush2.msra.mxu0 0.0
      %1834 = vmatprep.subr.mxu0 0.0
      %1835 = vmatpush2.msra.mxu0 0.0
      %1836 = vmatprep.subr.mxu0 0.0
      %1837 = vmatpush2.msra.mxu0 0.0
      %1838 = vmatprep.subr.mxu0 0.0
      %1839 = vmatpush2.msra.mxu0 0.0
      %1840 = vmatprep.subr.mxu0 0.0
      %1841 = vmatpush2.msra.mxu0 0.0
      %1842 = vmatprep.mubr.f32.mxu0 0.0
      %1843 = vmatmul.mubr.f32.gmra.mxu0 %v1767
      %v1844 = vpop.f32.mrf.mxu0
      %v1845 = vadd.f32 %v1748, %v1844
      %v1846 = vpop.f32.mrf.mxu0
      %1847 = vmatprep.mubr.f32.mxu0 0.0
      %1848 = vmatmul.mubr.f32.gmra.mxu0 %v1770
      %v1849 = vpop.f32.mrf.mxu0
      %v1850 = vadd.f32 %v1753, %v1849
      %v1851 = vpop.f32.mrf.mxu0
      %1852 = vmatprep.mubr.f32.mxu0 0.0
      %1853 = vmatmul.mubr.f32.gmra.mxu0 %v1773
      %v1854 = vpop.f32.mrf.mxu0
      %v1855 = vadd.f32 %v1758, %v1854
      %v1856 = vpop.f32.mrf.mxu0
      %1857 = vmatprep.mubr.f32.mxu0 0.0
      %1858 = vmatmul.mubr.f32.gmra.mxu0 %v1776
      %v1859 = vpop.f32.mrf.mxu0
      %v1860 = vadd.f32 %v1763, %v1859
      %v1861 = vpop.f32.mrf.mxu0
      %1862 = vdwg.mxu0
      %s1863 = scalar_lea.vmem %s5, 160
      %v1864 = vld [vmem:[%s1863] sm:$0xff]
      %v1865 = vld [vmem:[%s1863 + $0x8] sm:$0xff]
      %v1866 = vld [vmem:[%s1863 + $0x10] sm:$0xff]
      %v1867 = vld [vmem:[%s1863 + $0x18] sm:$0xff]
      %1868 = vrot.lane.b32.xlu0 %v1620, 126
      %v1869 = vpop.permute.xlu0 %1868
      %1870 = vrot.lane.b32.xlu0 %v1625, 126
      %v1871 = vpop.permute.xlu0 %1870
      %1872 = vrot.lane.b32.xlu0 %v1630, 126
      %v1873 = vpop.permute.xlu0 %1872
      %1874 = vrot.lane.b32.xlu0 %v1635, 126
      %v1875 = vpop.permute.xlu0 %1874
      %v1881 = vsel %vm782, %v1864, 0
      %v1884 = vsel %vm782, %v1865, 0
      %v1887 = vsel %vm782, %v1866, 0
      %v1890 = vsel %vm782, %v1867, 0
      %1892 = vmatprep.subr.mxu0 0.0
      %1893 = vmatpush1.msra.mxu0 0.0
      %1894 = vmatprep.subr.mxu0 0.0
      %1895 = vmatpush1.msra.mxu0 0.0
      %1896 = vmatprep.subr.mxu0 0.0
      %1897 = vmatpush1.msra.mxu0 0.0
      %1898 = vmatprep.subr.mxu0 0.0
      %1899 = vmatpush1.msra.mxu0 0.0
      %1900 = vmatprep.subr.mxu0 0.0
      %1901 = vmatpush1.msra.mxu0 0.0
      %1902 = vmatprep.subr.mxu0 0.0
      %1903 = vmatpush1.msra.mxu0 0.0
      %1904 = vmatprep.subr.mxu0 0.0
      %1905 = vmatpush1.msra.mxu0 0.0
      %1906 = vmatprep.subr.mxu0 0.0
      %1907 = vmatpush1.msra.mxu0 0.0
      %1908 = vmatprep.subr.mxu0 0.0
      %1909 = vmatpush1.msra.mxu0 0.0
      %1910 = vmatprep.subr.mxu0 0.0
      %1911 = vmatpush1.msra.mxu0 0.0
      %1912 = vmatprep.subr.mxu0 0.0
      %1913 = vmatpush1.msra.mxu0 0.0
      %1914 = vmatprep.subr.mxu0 0.0
      %1915 = vmatpush1.msra.mxu0 0.0
      %1916 = vmatprep.subr.mxu0 0.0
      %1917 = vmatpush1.msra.mxu0 %v1875
      %1918 = vmatprep.subr.mxu0 0.0
      %1919 = vmatpush1.msra.mxu0 %v1873
      %1920 = vmatprep.subr.mxu0 0.0
      %1921 = vmatpush1.msra.mxu0 %v1871
      %1922 = vmatprep.subr.mxu0 0.0
      %1923 = vmatpush1.msra.mxu0 %v1869
      %1924 = vmatprep.subr.mxu0 0.0
      %1925 = vmatpush2.msra.mxu0 0.0
      %1926 = vmatprep.subr.mxu0 0.0
      %1927 = vmatpush2.msra.mxu0 0.0
      %1928 = vmatprep.subr.mxu0 0.0
      %1929 = vmatpush2.msra.mxu0 0.0
      %1930 = vmatprep.subr.mxu0 0.0
      %1931 = vmatpush2.msra.mxu0 0.0
      %1932 = vmatprep.subr.mxu0 0.0
      %1933 = vmatpush2.msra.mxu0 0.0
      %1934 = vmatprep.subr.mxu0 0.0
      %1935 = vmatpush2.msra.mxu0 0.0
      %1936 = vmatprep.subr.mxu0 0.0
      %1937 = vmatpush2.msra.mxu0 0.0
      %1938 = vmatprep.subr.mxu0 0.0
      %1939 = vmatpush2.msra.mxu0 0.0
      %1940 = vmatprep.subr.mxu0 0.0
      %1941 = vmatpush2.msra.mxu0 0.0
      %1942 = vmatprep.subr.mxu0 0.0
      %1943 = vmatpush2.msra.mxu0 0.0
      %1944 = vmatprep.subr.mxu0 0.0
      %1945 = vmatpush2.msra.mxu0 0.0
      %1946 = vmatprep.subr.mxu0 0.0
      %1947 = vmatpush2.msra.mxu0 0.0
      %1948 = vmatprep.subr.mxu0 0.0
      %1949 = vmatpush2.msra.mxu0 0.0
      %1950 = vmatprep.subr.mxu0 0.0
      %1951 = vmatpush2.msra.mxu0 0.0
      %1952 = vmatprep.subr.mxu0 0.0
      %1953 = vmatpush2.msra.mxu0 0.0
      %1954 = vmatprep.subr.mxu0 0.0
      %1955 = vmatpush2.msra.mxu0 0.0
      %1956 = vmatprep.mubr.f32.mxu0 0.0
      %1957 = vmatmul.mubr.f32.gmra.mxu0 %v1881
      %v1958 = vpop.f32.mrf.mxu0
      %v1959 = vadd.f32 0.0, %v1958
      %v1960 = vpop.f32.mrf.mxu0
      %1961 = vmatprep.mubr.f32.mxu0 0.0
      %1962 = vmatmul.mubr.f32.gmra.mxu0 %v1884
      %v1963 = vpop.f32.mrf.mxu0
      %v1964 = vadd.f32 0.0, %v1963
      %v1965 = vpop.f32.mrf.mxu0
      %1966 = vmatprep.mubr.f32.mxu0 0.0
      %1967 = vmatmul.mubr.f32.gmra.mxu0 %v1887
      %v1968 = vpop.f32.mrf.mxu0
      %v1969 = vadd.f32 0.0, %v1968
      %v1970 = vpop.f32.mrf.mxu0
      %1971 = vmatprep.mubr.f32.mxu0 0.0
      %1972 = vmatmul.mubr.f32.gmra.mxu0 %v1890
      %v1973 = vpop.f32.mrf.mxu0
      %v1974 = vadd.f32 0.0, %v1973
      %v1975 = vpop.f32.mrf.mxu0
      %1976 = vdwg.mxu0
      %v1977 = vadd.f32 %v1845, %v1959
      %v1978 = vadd.f32 %v1850, %v1964
      %v1979 = vadd.f32 %v1855, %v1969
      %v1980 = vadd.f32 %v1860, %v1974
      %1982 = vset.pattern.permute.xlu0 0
      %1983 = vperm.xlu0 %1982, %v1639
      %v1984 = vpop.permute.xlu0 %1983
      %1987 = vset.pattern.permute.xlu0 0
      %1988 = vperm.xlu0 %1987, %v1640
      %v1989 = vpop.permute.xlu0 %1988
      %1992 = vset.pattern.permute.xlu0 0
      %1993 = vperm.xlu0 %1992, %v1641
      %v1994 = vpop.permute.xlu0 %1993
      %1997 = vset.pattern.permute.xlu0 0
      %1998 = vperm.xlu0 %1997, %v1642
      %v1999 = vpop.permute.xlu0 %1998
      %v2001 = vadd.f32 %v1977, %v1984
      %v2002 = vadd.f32 %v1978, %v1989
      %v2003 = vadd.f32 %v1979, %v1994
      %v2004 = vadd.f32 %v1980, %v1999
      %v2005 = vmul.f32 %v2001, 0.01
      %v2006 = vmul.f32 %v2002, 0.01
      %v2007 = vmul.f32 %v2003, 0.01
      %v2008 = vmul.f32 %v2004, 0.01
      %v2009 = vmax.f32 %v2001, %v2005
      %v2010 = vmax.f32 %v2002, %v2006
      %v2011 = vmax.f32 %v2003, %v2007
      %v2012 = vmax.f32 %v2004, %v2008
      %2017 = vrot.lane.b32.xlu0 %v2009, 127
      %v2018 = vpop.permute.xlu0 %2017
      %2019 = vrot.lane.b32.xlu0 %v2010, 127
      %v2020 = vpop.permute.xlu0 %2019
      %2021 = vrot.lane.b32.xlu0 %v2011, 127
      %v2022 = vpop.permute.xlu0 %2021
      %2023 = vrot.lane.b32.xlu0 %v2012, 127
      %v2024 = vpop.permute.xlu0 %2023
      %v2029 = vmax.f32 %v2009, %v2018
      %v2030 = vmax.f32 %v2010, %v2020
      %v2031 = vmax.f32 %v2011, %v2022
      %v2032 = vmax.f32 %v2012, %v2024
      %v2033 = vld [vmem:[%s9] sm:$0xff]
      %v2034 = vld [vmem:[%s9 + $0x8] sm:$0xff]
      %v2035 = vld [vmem:[%s9 + $0x10] sm:$0xff]
      %v2036 = vld [vmem:[%s9 + $0x18] sm:$0xff]
      %v2037 = vld [vmem:[%s9 + $0x20] sm:$0xff]
      %v2038 = vld [vmem:[%s9 + $0x28] sm:$0xff]
      %v2039 = vld [vmem:[%s9 + $0x30] sm:$0xff]
      %v2040 = vld [vmem:[%s9 + $0x38] sm:$0x1]
      %vm2041 = vcmask 465920
      %v2043 = vsel %vm2041, %v2029, 0
      %v2046 = vsel %vm2041, %v2030, 0
      %v2049 = vsel %vm2041, %v2031, 0
      %v2052 = vsel %vm2041, %v2032, 0
      %vm2054 = vcmask 1040384
      %v2056 = vsel %vm2054, %v2040, 0
      %2058 = vmatprep.subr.mxu0 0.0
      %2059 = vmatpush1.msra.mxu0 0.0
      %2060 = vmatprep.subr.mxu0 0.0
      %2061 = vmatpush1.msra.mxu0 0.0
      %2062 = vmatprep.subr.mxu0 0.0
      %2063 = vmatpush1.msra.mxu0 0.0
      %2064 = vmatprep.subr.mxu0 0.0
      %2065 = vmatpush1.msra.mxu0 0.0
      %2066 = vmatprep.subr.mxu0 0.0
      %2067 = vmatpush1.msra.mxu0 0.0
      %2068 = vmatprep.subr.mxu0 0.0
      %2069 = vmatpush1.msra.mxu0 0.0
      %2070 = vmatprep.subr.mxu0 0.0
      %2071 = vmatpush1.msra.mxu0 0.0
      %2072 = vmatprep.subr.mxu0 0.0
      %2073 = vmatpush1.msra.mxu0 0.0
      %2074 = vmatprep.subr.mxu0 0.0
      %2075 = vmatpush1.msra.mxu0 %v2056
      %2076 = vmatprep.subr.mxu0 0.0
      %2077 = vmatpush1.msra.mxu0 %v2039
      %2078 = vmatprep.subr.mxu0 0.0
      %2079 = vmatpush1.msra.mxu0 %v2038
      %2080 = vmatprep.subr.mxu0 0.0
      %2081 = vmatpush1.msra.mxu0 %v2037
      %2082 = vmatprep.subr.mxu0 0.0
      %2083 = vmatpush1.msra.mxu0 %v2036
      %2084 = vmatprep.subr.mxu0 0.0
      %2085 = vmatpush1.msra.mxu0 %v2035
      %2086 = vmatprep.subr.mxu0 0.0
      %2087 = vmatpush1.msra.mxu0 %v2034
      %2088 = vmatprep.subr.mxu0 0.0
      %2089 = vmatpush1.msra.mxu0 %v2033
      %2090 = vmatprep.subr.mxu0 0.0
      %2091 = vmatpush2.msra.mxu0 0.0
      %2092 = vmatprep.subr.mxu0 0.0
      %2093 = vmatpush2.msra.mxu0 0.0
      %2094 = vmatprep.subr.mxu0 0.0
      %2095 = vmatpush2.msra.mxu0 0.0
      %2096 = vmatprep.subr.mxu0 0.0
      %2097 = vmatpush2.msra.mxu0 0.0
      %2098 = vmatprep.subr.mxu0 0.0
      %2099 = vmatpush2.msra.mxu0 0.0
      %2100 = vmatprep.subr.mxu0 0.0
      %2101 = vmatpush2.msra.mxu0 0.0
      %2102 = vmatprep.subr.mxu0 0.0
      %2103 = vmatpush2.msra.mxu0 0.0
      %2104 = vmatprep.subr.mxu0 0.0
      %2105 = vmatpush2.msra.mxu0 0.0
      %2106 = vmatprep.subr.mxu0 0.0
      %2107 = vmatpush2.msra.mxu0 0.0
      %2108 = vmatprep.subr.mxu0 0.0
      %2109 = vmatpush2.msra.mxu0 0.0
      %2110 = vmatprep.subr.mxu0 0.0
      %2111 = vmatpush2.msra.mxu0 0.0
      %2112 = vmatprep.subr.mxu0 0.0
      %2113 = vmatpush2.msra.mxu0 0.0
      %2114 = vmatprep.subr.mxu0 0.0
      %2115 = vmatpush2.msra.mxu0 0.0
      %2116 = vmatprep.subr.mxu0 0.0
      %2117 = vmatpush2.msra.mxu0 0.0
      %2118 = vmatprep.subr.mxu0 0.0
      %2119 = vmatpush2.msra.mxu0 0.0
      %2120 = vmatprep.subr.mxu0 0.0
      %2121 = vmatpush2.msra.mxu0 0.0
      %2122 = vmatprep.mubr.f32.mxu0 0.0
      %2123 = vmatmul.mubr.f32.gmra.mxu0 %v2043
      %v2124 = vpop.f32.mrf.mxu0
      %v2125 = vadd.f32 0.0, %v2124
      %v2126 = vpop.f32.mrf.mxu0
      %2127 = vmatprep.mubr.f32.mxu0 0.0
      %2128 = vmatmul.mubr.f32.gmra.mxu0 %v2046
      %v2129 = vpop.f32.mrf.mxu0
      %v2130 = vadd.f32 0.0, %v2129
      %v2131 = vpop.f32.mrf.mxu0
      %2132 = vmatprep.mubr.f32.mxu0 0.0
      %2133 = vmatmul.mubr.f32.gmra.mxu0 %v2049
      %v2134 = vpop.f32.mrf.mxu0
      %v2135 = vadd.f32 0.0, %v2134
      %v2136 = vpop.f32.mrf.mxu0
      %2137 = vmatprep.mubr.f32.mxu0 0.0
      %2138 = vmatmul.mubr.f32.gmra.mxu0 %v2052
      %v2139 = vpop.f32.mrf.mxu0
      %v2140 = vadd.f32 0.0, %v2139
      %v2141 = vpop.f32.mrf.mxu0
      %2142 = vdwg.mxu0
      %vm2143 = vcmask 228352
      %2144 = vst.msk [vmem:[%s356] sm:$0xff] %vm2143, %v2125
      %2145 = vst.msk [vmem:[%s356 + $0x8] sm:$0xff] %vm2143, %v2130
      %2146 = vst.msk [vmem:[%s356 + $0x10] sm:$0xff] %vm2143, %v2135
      %2147 = vst.msk [vmem:[%s356 + $0x18] sm:$0xff] %vm2143, %v2140
      %p2148 = scmp.lt.s32.totalorder %s21, 1
      %s2149 = scalar_select %p2148, %s21, 1
      %s2150 = smul.addr %s2149, 4
      %s2151 = smul.addr %s2150, 8
      %s2152 = scalar_lea.vmem %s10, %s2151
      // Predicated region
      $region61: #{tpu_custom_call.1} parent=59 // pred_check
        %p2153 = pneg %p254
      $region62: #{tpu_custom_call.1} parent=59 // pred_check_branch
        %2155 = sbr.rel (%p2153) target = $region64
      $region63: #{tpu_custom_call.1} parent=59 // pred_region
        _
      $region64: #{tpu_custom_call.1} parent=59 // pred_fallthru
        _
    $region60: #{tpu_custom_call.1} parent=5 // pred_fallthru
      _
    %p2156 = scmp.le.s32.totalorder 2, %s16
    // Predicated region
    $region65: #{tpu_custom_call.1} parent=5 // pred_check
      %p2157 = pneg %p2156
    $region66: #{tpu_custom_call.1} parent=5 // pred_check_branch
      %2159 = sbr.rel (%p2157) target = $region68
    $region67: #{tpu_custom_call.1} parent=5 // pred_region
      %s2160 = ssub.s32 %s16, 2
      // Predicated region
      $region69: #{tpu_custom_call.1} parent=67 // pred_check
        %p2161 = pneg %p260
      $region70: #{tpu_custom_call.1} parent=67 // pred_check_branch
        %2163 = sbr.rel (%p2161) target = $region72
      $region71: #{tpu_custom_call.1} parent=67 // pred_region
        %p2164 = scmp.lt.s32.totalorder %s22, 1
        %s2165 = scalar_select %p2164, %s22, 1
        %s2166 = smul.addr %s2165, 4
        %s2167 = smul.addr %s2166, 8
        %s2168 = scalar_lea.vmem %s10, %s2167
      $region72: #{tpu_custom_call.1} parent=67 // pred_fallthru
        _
    $region68: #{tpu_custom_call.1} parent=5 // pred_fallthru
      _
  $region6: #{tpu_custom_call.1} parent=0 // loop_footer
    %s20 = sadd.s32 1, %s16
  $region7: #{tpu_custom_call.1} parent=0 // loop_footer_branch
    %15 = sbr.rel target = $region3
  $region8: #{tpu_custom_call.1} parent=0 // loop_exit
    _

</llo_original>
